<compile_context>
chip_gen: v7x
topology: tpu7x:2x2x1
jax: 0.10.0
libtpu: 0.0.40
codegen_flags: <defaults>
</compile_context>

<pallas_src>
import jax
import jax.numpy as jnp
from jax.experimental import pallas as pl
from jax.experimental.pallas import tpu as pltpu

_K1, _K2, _K3 = 15, 31, 7


# ---------------------------------------------------------------------------
# kernel
# ---------------------------------------------------------------------------
def _make_kernel(last):
    def kernel(x_ref, vec_ref, wsq_ref, wl_ref, bl_ref, o_ref):
        x = x_ref[...].astype(jnp.float32)            # (BT, D) lane-dense rows
        v = vec_ref[...]                              # (14, D) affine / bias rows

        def row(i):                                   # (1, D) broadcast row
            return v[i:i + 1, :]

        def mm(a, w):                                 # (BT, D) @ (D, N) on the MXU
            return jnp.dot(a, w, preferred_element_type=jnp.float32)

        # ---- cross-patch MLP: Linear(P,P) as kron(W^T, I_C) right-multiplies ----
        z = x * row(0) + row(1)                                   # Afine_p1
        z = jnp.maximum(mm(z, wsq_ref[0]) + row(8), 0.0)          # linear0 + ReLU
        z = jnp.maximum(mm(z, wsq_ref[1]) + row(9), 0.0)          # linear1 + ReLU
        z = mm(z, wsq_ref[2]) + row(10)                           # linear
        x_cc = x + (z * row(2) + row(3))                          # Afine_p2 + residual

        # ---- depthwise-conv stack (conv + eval-BN folded into matrix / bias) ----
        y = x_cc * row(4) + row(5)                                # Afine_p3
        y = jnp.maximum(mm(y, wsq_ref[3]) + row(11), 0.0)         # cnn1+bn1+ReLU
        y = jnp.maximum(mm(y, wsq_ref[4]) + row(12), 0.0)         # cnn2+bn2+ReLU
        y = jnp.maximum(mm(y, wsq_ref[5]) + row(13), 0.0)         # cnn3+bn3+ReLU
        y = y * row(6) + row(7)                                   # Afine_p4

        # ---- spatt: 7x7 spatial attention as one dense (D, D) matmul ----
        att = mm(y, wsq_ref[6])
        y = y * jax.nn.sigmoid(att)

        x_out = x_cc + y                              # Dropout(0.05): identity (eval)
        if last:
            out = mm(x_out, wl_ref[...]) + bl_ref[...]   # (BT, P*O) lane-dense
        else:
            out = x_out
        o_ref[...] = out.astype(o_ref.dtype)

    return kernel


# ---------------------------------------------------------------------------
# host-side weight construction (all preprocessing outside the kernel)
# ---------------------------------------------------------------------------
def _dwconv_bn_matrix(w, scale, C):
    """Depthwise Conv1d (channels=patch, length=channel) + eval-BN scale as a
    block-diagonal (P*C, P*C) matrix for right-multiplying flat (p*C+c) rows."""
    P, K = w.shape
    pad = (K - 1) // 2
    ci = jnp.arange(C)[:, None]                  # input channel index c'
    co = jnp.arange(C)[None, :]                  # output channel index c
    k = ci - co + pad
    valid = (k >= 0) & (k < K)
    blocks = jnp.where(valid[None], w[:, jnp.clip(k, 0, K - 1)], 0.0)   # (P, C, C)
    blocks = blocks * scale[:, None, None]       # fold BN scale into output columns
    eye_p = jnp.eye(P, dtype=w.dtype)
    return jnp.einsum('pq,pij->piqj', eye_p, blocks).reshape(P * C, P * C)


def _spatt_matrix(weff, P, C):
    """7x7 spatt Conv2d over the (patch, channel) grid as a dense (P*C, P*C) matrix."""
    dp = jnp.arange(P)[:, None] - jnp.arange(P)[None, :] + 3    # (p_in, p_out)
    dc = jnp.arange(C)[:, None] - jnp.arange(C)[None, :] + 3    # (c_in, c_out)
    vp = (dp >= 0) & (dp < 7)
    vc = (dc >= 0) & (dc < 7)
    m4 = weff[jnp.clip(dp, 0, 6)[:, :, None, None],
              jnp.clip(dc, 0, 6)[None, None, :, :]]             # (P, P, C, C)
    m4 = jnp.where(vp[:, :, None, None] & vc[None, None, :, :], m4, 0.0)
    # (p_in, p_out, c_in, c_out) -> (p_in, c_in, p_out, c_out) -> (P*C, P*C)
    return m4.transpose(0, 2, 1, 3).reshape(P * C, P * C)


def pack_params(p, P, C, O, last=True):
    """Convert the module's natural parameters into the kernel's lane-dense matrix form."""
    f32 = jnp.float32
    D = P * C
    eye_c = jnp.eye(C, dtype=f32)

    aff_flat = jnp.tile(p['aff'].astype(f32), (1, P))            # (8, D): flat[p*C+c]=aff[c]

    wcp = [jnp.kron(p['wlin'][i].T.astype(f32), eye_c) for i in range(3)]
    bcp = [jnp.repeat(p['blin'][i][:, 0].astype(f32), C) for i in range(3)]

    bnss = p['bnss'].astype(f32)                                 # (P, 6) scale/shift pairs
    wcv, bcv = [], []
    for w, si in ((p['w1'], 0), (p['w2'], 2), (p['w3'], 4)):
        wcv.append(_dwconv_bn_matrix(w.astype(f32), bnss[:, si], C))
        bcv.append(jnp.repeat(bnss[:, si + 1], C))

    wsp = _spatt_matrix(p['weff'].astype(f32), P, C)

    vec = jnp.concatenate([aff_flat, jnp.stack(bcp), jnp.stack(bcv)], axis=0)  # (14, D)
    wsq = jnp.stack(wcp + wcv + [wsp], axis=0)                                 # (7, D, D)

    if last:
        wl = jnp.kron(jnp.eye(P, dtype=f32), p['wl'].astype(f32))   # (D, P*O) block-diag
        bl = jnp.tile(p['bl'][0].astype(f32), P)[None, :]           # (1, P*O)
    else:
        wl = jnp.eye(D, dtype=f32)
        bl = jnp.zeros((1, D), f32)
    return dict(vec=vec, wsq=wsq, wl=wl, bl=bl)


# ---------------------------------------------------------------------------
# wrapper
# ---------------------------------------------------------------------------
def _choose_batch_tile(B, block_b):
    Bp8 = 8 * pl.cdiv(B, 8)                         # sublane-align the batch axis
    BT = min(max(8, 8 * (int(block_b) // 8)), Bp8)  # batch tile: multiple of 8
    G = pl.cdiv(Bp8, BT)
    if G == 1 and BT >= 16:                         # v7x: keep both TensorCores busy
        BT = max(8, 8 * ((BT // 2) // 8))
        G = pl.cdiv(Bp8, BT)
    return BT, G


def cnn_mlp_forward(x, packed, last=True, block_b=128):
    B, P, C = x.shape
    D = P * C
    Do = packed['wl'].shape[1] if last else D

    BT, G = _choose_batch_tile(B, block_b)
    Bp = G * BT

    xf = x.reshape(B, D)                            # lane-dense (B, P*C)
    if Bp != B:
        xf = jnp.pad(xf, ((0, Bp - B), (0, 0)))

    out = pl.pallas_call(
        _make_kernel(last),
        out_shape=jax.ShapeDtypeStruct((Bp, Do), x.dtype),
        grid=(G,),
        in_specs=[
            pl.BlockSpec((BT, D), lambda g: (g, 0)),        # x rows (BT per step)
            pl.BlockSpec((14, D), lambda g: (0, 0)),        # affine / bias rows
            pl.BlockSpec((7, D, D), lambda g: (0, 0, 0)),   # stacked (D,D) weights
            pl.BlockSpec((D, Do), lambda g: (0, 0)),        # last linear (block-diag)
            pl.BlockSpec((1, Do), lambda g: (0, 0)),        # last bias (flat)
        ],
        out_specs=pl.BlockSpec((BT, Do), lambda g: (g, 0)),  # lane-dense output
        compiler_params=pltpu.CompilerParams(
            dimension_semantics=("parallel",),
            vmem_limit_bytes=32 * 1024 * 1024),
    )(xf, packed['vec'], packed['wsq'], packed['wl'], packed['bl'])

    out = out[:B] if Bp != B else out
    O = Do // P if last else C
    return out.reshape(B, P, O)


# ---------------------------------------------------------------------------
# parameters + pure-JAX reference (validation)
# ---------------------------------------------------------------------------
def init_params(key, P, C, O):
    ks = jax.random.split(key, 11)
    n = lambda k, shape, s=0.1: (s * jax.random.normal(k, shape)).astype(jnp.float32)
    gs = (1.0 + 0.1 * jax.random.normal(ks[0], (4, C))).astype(jnp.float32)
    bs = n(ks[1], (4, C))
    aff = jnp.stack([gs[0], bs[0], gs[1], bs[1], gs[2], bs[2], gs[3], bs[3]], 0)
    wlin = n(ks[2], (3, P, P), 0.2)          # left form: out[q] = sum_p W[q,p]*in[p]
    blin = n(ks[3], (3, P, 1), 0.1)
    w1 = n(ks[4], (P, _K1), 0.15)
    w2 = n(ks[5], (P, _K2), 0.1)
    w3 = n(ks[6], (P, _K3), 0.2)
    cb = n(ks[7], (3, P), 0.1)               # conv biases
    eps = 1e-5                               # BatchNorm1d @ init (eval mode)
    gamma = jnp.ones((3, P), jnp.float32); beta = jnp.zeros((3, P), jnp.float32)
    rm = jnp.zeros((3, P), jnp.float32); rv = jnp.ones((3, P), jnp.float32)
    scale = gamma / jnp.sqrt(rv + eps)
    shift = (cb - rm) * scale + beta         # conv bias folded into BN shift
    bnss = jnp.stack([scale[0], shift[0], scale[1], shift[1],
                      scale[2], shift[2]], axis=1)           # (P, 6)
    w2d = n(ks[8], (1, 2, 7, 7), 0.15)       # spatt Conv2d(2->1, 7x7, no bias)
    weff = w2d[0, 0] + w2d[0, 1]             # two identical input channels
    wl = n(ks[9], (C, O), 0.15)              # pre-transposed last_linear weight
    bl = n(ks[10], (1, O), 0.1)
    return dict(aff=aff, wlin=wlin, blin=blin, w1=w1, w2=w2, w3=w3,
                bnss=bnss, weff=weff, wl=wl, bl=bl)


def reference_forward(x, p, last=True):
    aff = p['aff']
    g1, b1, g2, b2, g3, b3, g4, b4 = [aff[i][None, None, :] for i in range(8)]
    z = x * g1 + b1
    z = jax.nn.relu(jnp.einsum('qp,bpc->bqc', p['wlin'][0], z) + p['blin'][0][None])
    z = jax.nn.relu(jnp.einsum('qp,bpc->bqc', p['wlin'][1], z) + p['blin'][1][None])
    z = jnp.einsum('qp,bpc->bqc', p['wlin'][2], z) + p['blin'][2][None]
    x_cc = x + (z * g2 + b2)
    y = x_cc * g3 + b3

    def conv_bn_relu(y, w, scale, shift, K):
        pad = (K - 1) // 2
        Cl = y.shape[2]
        yp = jnp.pad(y, ((0, 0), (0, 0), (pad, pad)))
        out = sum(w[None, :, k:k + 1] * yp[:, :, k:k + Cl] for k in range(K))
        return jax.nn.relu(out * scale[None, :, None] + shift[None, :, None])

    bnss = p['bnss']
    y = conv_bn_relu(y, p['w1'], bnss[:, 0], bnss[:, 1], _K1)
    y = conv_bn_relu(y, p['w2'], bnss[:, 2], bnss[:, 3], _K2)
    y = conv_bn_relu(y, p['w3'], bnss[:, 4], bnss[:, 5], _K3)
    y = y * g4 + b4
    Pp, Cc = y.shape[1], y.shape[2]
    yp = jnp.pad(y, ((0, 0), (3, 3), (3, 3)))
    att = sum(p['weff'][kh, kw] * yp[:, kh:kh + Pp, kw:kw + Cc]
              for kh in range(7) for kw in range(7))
    y = y * jax.nn.sigmoid(att)
    x_out = x_cc + y
    if last:
        x_out = x_out @ p['wl'] + p['bl'][0]
    return x_out


if __name__ == "__main__":
    key = jax.random.PRNGKey(0)
    kx, kp, kx2 = jax.random.split(key, 3)
    B, P, C, O = 2, 8, 32, 16                # batch=2, patch=8, channel=32, out=16
    x = (0.5 * jax.random.normal(kx, (B, P, C))).astype(jnp.float32)
    params = init_params(kp, P, C, O)
    packed = pack_params(params, P, C, O, last=True)

    ref = reference_forward(x, params, last=True)

    # single grid step (BT=8, padded batch rows)
    out = jax.block_until_ready(cnn_mlp_forward(x, packed, last=True))
    assert out.shape == (B, P, O), out.shape
    err = float(jnp.max(jnp.abs(out - ref)))
    assert err < 5e-4, f"max abs err {err}"

    # multi-step grid path (BT=8, G=3) exercises batch tiling + padding rows
    B2 = 20
    x2 = (0.5 * jax.random.normal(kx2, (B2, P, C))).astype(jnp.float32)
    ref2 = reference_forward(x2, params, last=True)
    out2 = jax.block_until_ready(cnn_mlp_forward(x2, packed, last=True, block_b=8))
    err2 = float(jnp.max(jnp.abs(out2 - ref2)))
    assert err2 < 5e-4, f"max abs err (tiled) {err2}"

    print("KERNEL_OK")
</pallas_src>

<mosaic_0001>
module attributes {stable_mosaic.version = 11 : i64} {
  func.func @kernel(%arg0: i32, %arg1: memref<8x256xf32, #tpu.memory_space<vmem>>, %arg2: memref<14x256xf32, #tpu.memory_space<vmem>>, %arg3: memref<7x256x256xf32, #tpu.memory_space<vmem>>, %arg4: memref<256x128xf32, #tpu.memory_space<vmem>>, %arg5: memref<1x128xf32, #tpu.memory_space<vmem>>, %arg6: memref<8x128xf32, #tpu.memory_space<vmem>>) attributes {dimension_semantics = [#tpu.dimension_semantics<parallel>], iteration_bounds = array<i64: 1>, scalar_prefetch = 0 : i64, scratch_operands = 0 : i64, tpu.core_type = #tpu.core_type<tc>, window_params = [{transform_indices = @transform_0, window_bounds = array<i64: 8, 256>}, {pipeline_mode = #tpu.pipeline_mode<synchronous>, transform_indices = @transform_1, window_bounds = array<i64: 14, 256>}, {pipeline_mode = #tpu.pipeline_mode<synchronous>, transform_indices = @transform_2, window_bounds = array<i64: 7, 256, 256>}, {pipeline_mode = #tpu.pipeline_mode<synchronous>, transform_indices = @transform_3, window_bounds = array<i64: 256, 128>}, {pipeline_mode = #tpu.pipeline_mode<synchronous>, transform_indices = @transform_4, window_bounds = array<i64: 1, 128>}, {transform_indices = @transform_5, window_bounds = array<i64: 8, 128>}]} {
    %c0 = arith.constant 0 : index
    %c0_0 = arith.constant 0 : index
    %0 = vector.load %arg1[%c0, %c0_0] : memref<8x256xf32, #tpu.memory_space<vmem>>, vector<8x256xf32>
    %c0_1 = arith.constant 0 : index
    %c0_2 = arith.constant 0 : index
    %1 = vector.load %arg2[%c0_1, %c0_2] : memref<14x256xf32, #tpu.memory_space<vmem>>, vector<14x256xf32>
    %2 = vector.extract_strided_slice %1 {offsets = [0, 0], sizes = [1, 256], strides = [1, 1]} : vector<14x256xf32> to vector<1x256xf32>
    %3 = vector.broadcast %2 : vector<1x256xf32> to vector<8x256xf32>
    %4 = arith.mulf %0, %3 : vector<8x256xf32>
    %5 = vector.extract_strided_slice %1 {offsets = [1, 0], sizes = [1, 256], strides = [1, 1]} : vector<14x256xf32> to vector<1x256xf32>
    %6 = vector.broadcast %5 : vector<1x256xf32> to vector<8x256xf32>
    %7 = arith.addf %4, %6 : vector<8x256xf32>
    %c0_3 = arith.constant 0 : index
    %c0_4 = arith.constant 0 : index
    %c0_5 = arith.constant 0 : index
    %8 = vector.load %arg3[%c0_3, %c0_4, %c0_5] : memref<7x256x256xf32, #tpu.memory_space<vmem>>, vector<1x256x256xf32>
    %9 = vector.shape_cast %8 : vector<1x256x256xf32> to vector<256x256xf32>
    %cst = arith.constant dense<0.000000e+00> : vector<8x256xf32>
    %10 = tpu.matmul %7, %9, %cst {dimension_numbers = #tpu.dot_dimension_numbers<[1], [0], [0], [1], [0, 0, 1, 1], [], []>} : vector<8x256xf32>, vector<256x256xf32>, vector<8x256xf32> -> vector<8x256xf32>
    %11 = vector.extract_strided_slice %1 {offsets = [8, 0], sizes = [1, 256], strides = [1, 1]} : vector<14x256xf32> to vector<1x256xf32>
    %12 = vector.broadcast %11 : vector<1x256xf32> to vector<8x256xf32>
    %13 = arith.addf %10, %12 : vector<8x256xf32>
    %cst_6 = arith.constant 0.000000e+00 : f32
    %14 = vector.broadcast %cst_6 : f32 to vector<8x256xf32>
    %15 = arith.maximumf %13, %14 : vector<8x256xf32>
    %c1 = arith.constant 1 : index
    %c0_7 = arith.constant 0 : index
    %c0_8 = arith.constant 0 : index
    %16 = vector.load %arg3[%c1, %c0_7, %c0_8] : memref<7x256x256xf32, #tpu.memory_space<vmem>>, vector<1x256x256xf32>
    %17 = vector.shape_cast %16 : vector<1x256x256xf32> to vector<256x256xf32>
    %cst_9 = arith.constant dense<0.000000e+00> : vector<8x256xf32>
    %18 = tpu.matmul %15, %17, %cst_9 {dimension_numbers = #tpu.dot_dimension_numbers<[1], [0], [0], [1], [0, 0, 1, 1], [], []>} : vector<8x256xf32>, vector<256x256xf32>, vector<8x256xf32> -> vector<8x256xf32>
    %19 = vector.extract_strided_slice %1 {offsets = [9, 0], sizes = [1, 256], strides = [1, 1]} : vector<14x256xf32> to vector<1x256xf32>
    %20 = vector.broadcast %19 : vector<1x256xf32> to vector<8x256xf32>
    %21 = arith.addf %18, %20 : vector<8x256xf32>
    %cst_10 = arith.constant 0.000000e+00 : f32
    %22 = vector.broadcast %cst_10 : f32 to vector<8x256xf32>
    %23 = arith.maximumf %21, %22 : vector<8x256xf32>
    %c2 = arith.constant 2 : index
    %c0_11 = arith.constant 0 : index
    %c0_12 = arith.constant 0 : index
    %24 = vector.load %arg3[%c2, %c0_11, %c0_12] : memref<7x256x256xf32, #tpu.memory_space<vmem>>, vector<1x256x256xf32>
    %25 = vector.shape_cast %24 : vector<1x256x256xf32> to vector<256x256xf32>
    %cst_13 = arith.constant dense<0.000000e+00> : vector<8x256xf32>
    %26 = tpu.matmul %23, %25, %cst_13 {dimension_numbers = #tpu.dot_dimension_numbers<[1], [0], [0], [1], [0, 0, 1, 1], [], []>} : vector<8x256xf32>, vector<256x256xf32>, vector<8x256xf32> -> vector<8x256xf32>
    %27 = vector.extract_strided_slice %1 {offsets = [10, 0], sizes = [1, 256], strides = [1, 1]} : vector<14x256xf32> to vector<1x256xf32>
    %28 = vector.broadcast %27 : vector<1x256xf32> to vector<8x256xf32>
    %29 = arith.addf %26, %28 : vector<8x256xf32>
    %30 = vector.extract_strided_slice %1 {offsets = [2, 0], sizes = [1, 256], strides = [1, 1]} : vector<14x256xf32> to vector<1x256xf32>
    %31 = vector.broadcast %30 : vector<1x256xf32> to vector<8x256xf32>
    %32 = arith.mulf %29, %31 : vector<8x256xf32>
    %33 = vector.extract_strided_slice %1 {offsets = [3, 0], sizes = [1, 256], strides = [1, 1]} : vector<14x256xf32> to vector<1x256xf32>
    %34 = vector.broadcast %33 : vector<1x256xf32> to vector<8x256xf32>
    %35 = arith.addf %32, %34 : vector<8x256xf32>
    %36 = arith.addf %0, %35 : vector<8x256xf32>
    %37 = vector.extract_strided_slice %1 {offsets = [4, 0], sizes = [1, 256], strides = [1, 1]} : vector<14x256xf32> to vector<1x256xf32>
    %38 = vector.broadcast %37 : vector<1x256xf32> to vector<8x256xf32>
    %39 = arith.mulf %36, %38 : vector<8x256xf32>
    %40 = vector.extract_strided_slice %1 {offsets = [5, 0], sizes = [1, 256], strides = [1, 1]} : vector<14x256xf32> to vector<1x256xf32>
    %41 = vector.broadcast %40 : vector<1x256xf32> to vector<8x256xf32>
    %42 = arith.addf %39, %41 : vector<8x256xf32>
    %c3 = arith.constant 3 : index
    %c0_14 = arith.constant 0 : index
    %c0_15 = arith.constant 0 : index
    %43 = vector.load %arg3[%c3, %c0_14, %c0_15] : memref<7x256x256xf32, #tpu.memory_space<vmem>>, vector<1x256x256xf32>
    %44 = vector.shape_cast %43 : vector<1x256x256xf32> to vector<256x256xf32>
    %cst_16 = arith.constant dense<0.000000e+00> : vector<8x256xf32>
    %45 = tpu.matmul %42, %44, %cst_16 {dimension_numbers = #tpu.dot_dimension_numbers<[1], [0], [0], [1], [0, 0, 1, 1], [], []>} : vector<8x256xf32>, vector<256x256xf32>, vector<8x256xf32> -> vector<8x256xf32>
    %46 = vector.extract_strided_slice %1 {offsets = [11, 0], sizes = [1, 256], strides = [1, 1]} : vector<14x256xf32> to vector<1x256xf32>
    %47 = vector.broadcast %46 : vector<1x256xf32> to vector<8x256xf32>
    %48 = arith.addf %45, %47 : vector<8x256xf32>
    %cst_17 = arith.constant 0.000000e+00 : f32
    %49 = vector.broadcast %cst_17 : f32 to vector<8x256xf32>
    %50 = arith.maximumf %48, %49 : vector<8x256xf32>
    %c4 = arith.constant 4 : index
    %c0_18 = arith.constant 0 : index
    %c0_19 = arith.constant 0 : index
    %51 = vector.load %arg3[%c4, %c0_18, %c0_19] : memref<7x256x256xf32, #tpu.memory_space<vmem>>, vector<1x256x256xf32>
    %52 = vector.shape_cast %51 : vector<1x256x256xf32> to vector<256x256xf32>
    %cst_20 = arith.constant dense<0.000000e+00> : vector<8x256xf32>
    %53 = tpu.matmul %50, %52, %cst_20 {dimension_numbers = #tpu.dot_dimension_numbers<[1], [0], [0], [1], [0, 0, 1, 1], [], []>} : vector<8x256xf32>, vector<256x256xf32>, vector<8x256xf32> -> vector<8x256xf32>
    %54 = vector.extract_strided_slice %1 {offsets = [12, 0], sizes = [1, 256], strides = [1, 1]} : vector<14x256xf32> to vector<1x256xf32>
    %55 = vector.broadcast %54 : vector<1x256xf32> to vector<8x256xf32>
    %56 = arith.addf %53, %55 : vector<8x256xf32>
    %cst_21 = arith.constant 0.000000e+00 : f32
    %57 = vector.broadcast %cst_21 : f32 to vector<8x256xf32>
    %58 = arith.maximumf %56, %57 : vector<8x256xf32>
    %c5 = arith.constant 5 : index
    %c0_22 = arith.constant 0 : index
    %c0_23 = arith.constant 0 : index
    %59 = vector.load %arg3[%c5, %c0_22, %c0_23] : memref<7x256x256xf32, #tpu.memory_space<vmem>>, vector<1x256x256xf32>
    %60 = vector.shape_cast %59 : vector<1x256x256xf32> to vector<256x256xf32>
    %cst_24 = arith.constant dense<0.000000e+00> : vector<8x256xf32>
    %61 = tpu.matmul %58, %60, %cst_24 {dimension_numbers = #tpu.dot_dimension_numbers<[1], [0], [0], [1], [0, 0, 1, 1], [], []>} : vector<8x256xf32>, vector<256x256xf32>, vector<8x256xf32> -> vector<8x256xf32>
    %62 = vector.extract_strided_slice %1 {offsets = [13, 0], sizes = [1, 256], strides = [1, 1]} : vector<14x256xf32> to vector<1x256xf32>
    %63 = vector.broadcast %62 : vector<1x256xf32> to vector<8x256xf32>
    %64 = arith.addf %61, %63 : vector<8x256xf32>
    %cst_25 = arith.constant 0.000000e+00 : f32
    %65 = vector.broadcast %cst_25 : f32 to vector<8x256xf32>
    %66 = arith.maximumf %64, %65 : vector<8x256xf32>
    %67 = vector.extract_strided_slice %1 {offsets = [6, 0], sizes = [1, 256], strides = [1, 1]} : vector<14x256xf32> to vector<1x256xf32>
    %68 = vector.broadcast %67 : vector<1x256xf32> to vector<8x256xf32>
    %69 = arith.mulf %66, %68 : vector<8x256xf32>
    %70 = vector.extract_strided_slice %1 {offsets = [7, 0], sizes = [1, 256], strides = [1, 1]} : vector<14x256xf32> to vector<1x256xf32>
    %71 = vector.broadcast %70 : vector<1x256xf32> to vector<8x256xf32>
    %72 = arith.addf %69, %71 : vector<8x256xf32>
    %c6 = arith.constant 6 : index
    %c0_26 = arith.constant 0 : index
    %c0_27 = arith.constant 0 : index
    %73 = vector.load %arg3[%c6, %c0_26, %c0_27] : memref<7x256x256xf32, #tpu.memory_space<vmem>>, vector<1x256x256xf32>
    %74 = vector.shape_cast %73 : vector<1x256x256xf32> to vector<256x256xf32>
    %cst_28 = arith.constant dense<0.000000e+00> : vector<8x256xf32>
    %75 = tpu.matmul %72, %74, %cst_28 {dimension_numbers = #tpu.dot_dimension_numbers<[1], [0], [0], [1], [0, 0, 1, 1], [], []>} : vector<8x256xf32>, vector<256x256xf32>, vector<8x256xf32> -> vector<8x256xf32>
    %76 = arith.negf %75 : vector<8x256xf32>
    %77 = math.exp %76 : vector<8x256xf32>
    %cst_29 = arith.constant 1.000000e+00 : f32
    %78 = vector.broadcast %cst_29 : f32 to vector<8x256xf32>
    %79 = arith.addf %78, %77 : vector<8x256xf32>
    %80 = arith.divf %78, %79 : vector<8x256xf32>
    %81 = arith.mulf %72, %80 : vector<8x256xf32>
    %82 = arith.addf %36, %81 : vector<8x256xf32>
    %c0_30 = arith.constant 0 : index
    %c0_31 = arith.constant 0 : index
    %83 = vector.load %arg4[%c0_30, %c0_31] : memref<256x128xf32, #tpu.memory_space<vmem>>, vector<256x128xf32>
    %cst_32 = arith.constant dense<0.000000e+00> : vector<8x128xf32>
    %84 = tpu.matmul %82, %83, %cst_32 {dimension_numbers = #tpu.dot_dimension_numbers<[1], [0], [0], [1], [0, 0, 1, 1], [], []>} : vector<8x256xf32>, vector<256x128xf32>, vector<8x128xf32> -> vector<8x128xf32>
    %c0_33 = arith.constant 0 : index
    %c0_34 = arith.constant 0 : index
    %85 = vector.load %arg5[%c0_33, %c0_34] : memref<1x128xf32, #tpu.memory_space<vmem>>, vector<1x128xf32>
    %86 = vector.broadcast %85 : vector<1x128xf32> to vector<8x128xf32>
    %87 = arith.addf %84, %86 : vector<8x128xf32>
    %c0_35 = arith.constant 0 : index
    %c0_36 = arith.constant 0 : index
    %88 = vector.load %arg6[%c0_35, %c0_36] : memref<8x128xf32, #tpu.memory_space<vmem>>, vector<8x128xf32>
    tpu.vector_store %arg6[%c0_35, %c0_36], %87 {strides = array<i32>} : memref<8x128xf32, #tpu.memory_space<vmem>>, vector<8x128xf32>,
    return
  }
  func.func @transform_0(%arg0: i32) -> (i32, i32) {
    %c0_i32 = arith.constant 0 : i32
    %c0_i32_0 = arith.constant 0 : i32
    return %arg0, %c0_i32 : i32, i32
  }
  func.func @transform_1(%arg0: i32) -> (i32, i32) {
    %c0_i32 = arith.constant 0 : i32
    %c0_i32_0 = arith.constant 0 : i32
    %c0_i32_1 = arith.constant 0 : i32
    return %c0_i32, %c0_i32_0 : i32, i32
  }
  func.func @transform_2(%arg0: i32) -> (i32, i32, i32) {
    %c0_i32 = arith.constant 0 : i32
    %c0_i32_0 = arith.constant 0 : i32
    %c0_i32_1 = arith.constant 0 : i32
    %c0_i32_2 = arith.constant 0 : i32
    return %c0_i32, %c0_i32_0, %c0_i32_1 : i32, i32, i32
  }
  func.func @transform_3(%arg0: i32) -> (i32, i32) {
    %c0_i32 = arith.constant 0 : i32
    %c0_i32_0 = arith.constant 0 : i32
    %c0_i32_1 = arith.constant 0 : i32
    return %c0_i32, %c0_i32_0 : i32, i32
  }
  func.func @transform_4(%arg0: i32) -> (i32, i32) {
    %c0_i32 = arith.constant 0 : i32
    %c0_i32_0 = arith.constant 0 : i32
    %c0_i32_1 = arith.constant 0 : i32
    return %c0_i32, %c0_i32_0 : i32, i32
  }
  func.func @transform_5(%arg0: i32) -> (i32, i32) {
    %c0_i32 = arith.constant 0 : i32
    %c0_i32_0 = arith.constant 0 : i32
    return %arg0, %c0_i32 : i32, i32
  }
}

</mosaic_0001>

<llo_original>
// kernel: tpu_custom_call.1
$region0: #{tpu_custom_call.1}
  #allocation0 [shape = 'u32[]', space=smem, size = 0x4, offset = 0x4, fixed_abs, tag = 'smem constant byte address 0x4 - core index']
  #allocation1 [shape = 'u32[144,128]{1,0:T(1,128)}', space=vmem, size = 0x12000, scoped, tag = 'internal scratch']
  %s0 = inlined_call_operand.hbm [shape: f32[8,256], index: 0, kind: input, shape index: {}]
  %s1 = inlined_call_operand.hbm [shape: f32[14,256], index: 1, kind: input, shape index: {}]
  %s2 = inlined_call_operand.hbm [shape: f32[7,256,256], index: 2, kind: input, shape index: {}]
  %s3 = inlined_call_operand.hbm [shape: f32[256,128], index: 3, kind: input, shape index: {}]
  %s4 = inlined_call_operand.hbm [shape: f32[1,128], index: 4, kind: input, shape index: {}]
  %s5 = inlined_call_operand.hbm [shape: f32[8,128], index: 5, kind: output, shape index: {}]
  %s6 = sld [smem:[#allocation0]]
  $region50: #{tpu_custom_call.1} parent=0
    _
  %s8 = ssub.s32 1, %s6
  %s9 = scalar_select 0, %s8, %s6
  $region1: #{tpu_custom_call.1} parent=0
    #allocation2 [shape = 'u8[8192]{0}', space=vmem, size = 0x2000, scoped, tag = 'input window, operand 0, single buffered']
    #allocation3 [shape = 's32[1]{0}', space=sflag, size = 0x4, scoped, tag = 'scoped memory for tpu_custom_call.1']
    #allocation4 [shape = 's32[1]{0}', space=sflag, size = 0x4, scoped, tag = 'scoped memory for tpu_custom_call.1']
    #allocation5 [shape = 'u8[16384]{0}', space=vmem, size = 0x4000, scoped, tag = 'input window, operand 1, single buffered']
    #allocation6 [shape = 's32[1]{0}', space=sflag, size = 0x4, scoped, tag = 'scoped memory for tpu_custom_call.1']
    #allocation7 [shape = 'u8[1835008]{0}', space=vmem, size = 0x1c0000, scoped, tag = 'input window, operand 2, single buffered']
    #allocation8 [shape = 'u8[131072]{0}', space=vmem, size = 0x20000, scoped, tag = 'input window, operand 3, single buffered']
    #allocation9 [shape = 's32[1]{0}', space=sflag, size = 0x4, scoped, tag = 'scoped memory for tpu_custom_call.1']
    #allocation10 [shape = 'u8[512]{0}', space=vmem, size = 0x400, scoped, tag = 'input window, operand 4, single buffered']
    #allocation11 [shape = 'u8[4096]{0}', space=vmem, size = 0x1000, scoped, tag = 'output window, operand 0, single buffered']
    %10 = vsyncpa [#allocation3], 0
    %11 = vsyncpa [#allocation6], 0
    %12 = vsyncpa [#allocation9], 0
    %13 = vsyncpa [#allocation4], 0
    // Predicated region
    $region2: #{tpu_custom_call.1} parent=1 // pred_check
      _
    $region3: #{tpu_custom_call.1} parent=1 // pred_check_branch
      %15 = sbr.rel (0) target = $region5
    $region4: #{tpu_custom_call.1} parent=1 // pred_region
      %s17 = ssub.s32 256, 256
      %18 = vsyncadd [#allocation3], %s17
      %s20 = sshll.u32 [#allocation2], 4
      %s21 = int_to_ptr.vmem [resolvable:$true] %s20
      %23 = dma.hbm_to_vmem [thread:$0]  %s0, 256, %s21, [#allocation3]
    $region5: #{tpu_custom_call.1} parent=1 // pred_fallthru
      _
    // Predicated region
    $region6: #{tpu_custom_call.1} parent=1 // pred_check
      _
    $region7: #{tpu_custom_call.1} parent=1 // pred_check_branch
      %25 = sbr.rel (0) target = $region9
    $region8: #{tpu_custom_call.1} parent=1 // pred_region
      %s27 = ssub.s32 512, 512
      %28 = vsyncadd [#allocation6], %s27
      %s29 = sshll.u32 [#allocation5], 4
      %s30 = int_to_ptr.vmem [resolvable:$true] %s29
      %35 = dma.hbm_to_vmem [thread:$0]  %s1, 512, %s30, [#allocation6], 256, 256, 16
    $region9: #{tpu_custom_call.1} parent=1 // pred_fallthru
      _
    // Predicated region
    $region10: #{tpu_custom_call.1} parent=1 // pred_check
      _
    $region11: #{tpu_custom_call.1} parent=1 // pred_check_branch
      %37 = sbr.rel (0) target = $region13
    $region12: #{tpu_custom_call.1} parent=1 // pred_region
      %s39 = ssub.s32 57344, 57344
      %40 = vsyncadd [#allocation6], %s39
      %s41 = sshll.u32 [#allocation7], 4
      %s42 = int_to_ptr.vmem [resolvable:$true] %s41
      %47 = dma.hbm_to_vmem [thread:$0]  %s2, 57344, %s42, [#allocation6], 256, 256, 16
    $region13: #{tpu_custom_call.1} parent=1 // pred_fallthru
      _
    // Predicated region
    $region14: #{tpu_custom_call.1} parent=1 // pred_check
      _
    $region15: #{tpu_custom_call.1} parent=1 // pred_check_branch
      %49 = sbr.rel (0) target = $region17
    $region16: #{tpu_custom_call.1} parent=1 // pred_region
      %s51 = ssub.s32 4096, 4096
      %52 = vsyncadd [#allocation9], %s51
      %s53 = sshll.u32 [#allocation8], 4
      %s54 = int_to_ptr.vmem [resolvable:$true] %s53
      %59 = dma.hbm_to_vmem [thread:$0]  %s3, 4096, %s54, [#allocation9], 128, 128, 8
    $region17: #{tpu_custom_call.1} parent=1 // pred_fallthru
      _
    // Predicated region
    $region18: #{tpu_custom_call.1} parent=1 // pred_check
      _
    $region19: #{tpu_custom_call.1} parent=1 // pred_check_branch
      %61 = sbr.rel (0) target = $region21
    $region20: #{tpu_custom_call.1} parent=1 // pred_region
      %s63 = ssub.s32 16, 16
      %64 = vsyncadd [#allocation9], %s63
      %s66 = sshll.u32 [#allocation10], 4
      %s67 = int_to_ptr.vmem [resolvable:$true] %s66
      %69 = dma.hbm_to_vmem [thread:$0]  %s4, 16, %s67, [#allocation9]
    $region21: #{tpu_custom_call.1} parent=1 // pred_fallthru
      _
    // Predicated region
    $region22: #{tpu_custom_call.1} parent=1 // pred_check
      _
    $region23: #{tpu_custom_call.1} parent=1 // pred_check_branch
      %71 = sbr.rel (0) target = $region25
    $region24: #{tpu_custom_call.1} parent=1 // pred_region
      %72 = dma.done [#allocation3], 256
    $region25: #{tpu_custom_call.1} parent=1 // pred_fallthru
      _
    // Predicated region
    $region26: #{tpu_custom_call.1} parent=1 // pred_check
      _
    $region27: #{tpu_custom_call.1} parent=1 // pred_check_branch
      %74 = sbr.rel (0) target = $region29
    $region28: #{tpu_custom_call.1} parent=1 // pred_region
      %75 = dma.done [#allocation6], 512
    $region29: #{tpu_custom_call.1} parent=1 // pred_fallthru
      _
    // Predicated region
    $region30: #{tpu_custom_call.1} parent=1 // pred_check
      _
    $region31: #{tpu_custom_call.1} parent=1 // pred_check_branch
      %77 = sbr.rel (0) target = $region33
    $region32: #{tpu_custom_call.1} parent=1 // pred_region
      %78 = dma.done [#allocation6], 57344
    $region33: #{tpu_custom_call.1} parent=1 // pred_fallthru
      _
    // Predicated region
    $region34: #{tpu_custom_call.1} parent=1 // pred_check
      _
    $region35: #{tpu_custom_call.1} parent=1 // pred_check_branch
      %80 = sbr.rel (0) target = $region37
    $region36: #{tpu_custom_call.1} parent=1 // pred_region
      %81 = dma.done [#allocation9], 4096
    $region37: #{tpu_custom_call.1} parent=1 // pred_fallthru
      _
    // Predicated region
    $region38: #{tpu_custom_call.1} parent=1 // pred_check
      _
    $region39: #{tpu_custom_call.1} parent=1 // pred_check_branch
      %83 = sbr.rel (0) target = $region41
    $region40: #{tpu_custom_call.1} parent=1 // pred_region
      %84 = dma.done [#allocation9], 16
    $region41: #{tpu_custom_call.1} parent=1 // pred_fallthru
      _
    %v85 = vld [vmem:[#allocation2] sm:$0xff]
    %v86 = vld [vmem:[#allocation2 + $0x8] sm:$0xff]
    %v87 = vld [vmem:[#allocation5] sm:$0xff]
    %v88 = vld [vmem:[#allocation5 + $0x8] sm:$0xff]
    %v89 = vld [vmem:[#allocation5 + $0x10] sm:$0x3f]
    %v90 = vld [vmem:[#allocation5 + $0x18] sm:$0x3f]
    %v91 = vlaneseq
    %v92 = vshrl.u32 %v91, 7
    %v93 = vsub.s32 0, %v92
    %v94 = vrot.slane %v87, %v93
    %v95 = vlaneseq
    %v96 = vshrl.u32 %v95, 7
    %v97 = vsub.s32 0, %v96
    %v98 = vrot.slane %v88, %v97
    %v99 = vmul.f32 %v85, %v94
    %v100 = vmul.f32 %v86, %v98
    %v101 = vlaneseq
    %v102 = vshrl.u32 %v101, 7
    %v103 = vsub.s32 1, %v102
    %v104 = vrot.slane %v87, %v103
    %v105 = vlaneseq
    %v106 = vshrl.u32 %v105, 7
    %v107 = vsub.s32 1, %v106
    %v108 = vrot.slane %v88, %v107
    %v109 = vadd.f32 %v99, %v104
    %v110 = vadd.f32 %v100, %v108
    %v111 = vld [vmem:[#allocation7] sm:$0xff]
    %v112 = vld [vmem:[#allocation7 + $0x8] sm:$0xff]
    %v113 = vld [vmem:[#allocation7 + $0x10] sm:$0xff]
    %v114 = vld [vmem:[#allocation7 + $0x18] sm:$0xff]
    %v115 = vld [vmem:[#allocation7 + $0x20] sm:$0xff]
    %v116 = vld [vmem:[#allocation7 + $0x28] sm:$0xff]
    %v117 = vld [vmem:[#allocation7 + $0x30] sm:$0xff]
    %v118 = vld [vmem:[#allocation7 + $0x38] sm:$0xff]
    %v119 = vld [vmem:[#allocation7 + $0x40] sm:$0xff]
    %v120 = vld [vmem:[#allocation7 + $0x48] sm:$0xff]
    %v121 = vld [vmem:[#allocation7 + $0x50] sm:$0xff]
    %v122 = vld [vmem:[#allocation7 + $0x58] sm:$0xff]
    %v123 = vld [vmem:[#allocation7 + $0x60] sm:$0xff]
    %v124 = vld [vmem:[#allocation7 + $0x68] sm:$0xff]
    %v125 = vld [vmem:[#allocation7 + $0x70] sm:$0xff]
    %v126 = vld [vmem:[#allocation7 + $0x78] sm:$0xff]
    %v127 = vld [vmem:[#allocation7 + $0x80] sm:$0xff]
    %v128 = vld [vmem:[#allocation7 + $0x88] sm:$0xff]
    %v129 = vld [vmem:[#allocation7 + $0x90] sm:$0xff]
    %v130 = vld [vmem:[#allocation7 + $0x98] sm:$0xff]
    %v131 = vld [vmem:[#allocation7 + $0xa0] sm:$0xff]
    %v132 = vld [vmem:[#allocation7 + $0xa8] sm:$0xff]
    %v133 = vld [vmem:[#allocation7 + $0xb0] sm:$0xff]
    %v134 = vld [vmem:[#allocation7 + $0xb8] sm:$0xff]
    %v135 = vld [vmem:[#allocation7 + $0xc0] sm:$0xff]
    %v136 = vld [vmem:[#allocation7 + $0xc8] sm:$0xff]
    %v137 = vld [vmem:[#allocation7 + $0xd0] sm:$0xff]
    %v138 = vld [vmem:[#allocation7 + $0xd8] sm:$0xff]
    %v139 = vld [vmem:[#allocation7 + $0xe0] sm:$0xff]
    %v140 = vld [vmem:[#allocation7 + $0xe8] sm:$0xff]
    %v141 = vld [vmem:[#allocation7 + $0xf0] sm:$0xff]
    %v142 = vld [vmem:[#allocation7 + $0xf8] sm:$0xff]
    %v143 = vld [vmem:[#allocation7 + $0x100] sm:$0xff]
    %v144 = vld [vmem:[#allocation7 + $0x108] sm:$0xff]
    %v145 = vld [vmem:[#allocation7 + $0x110] sm:$0xff]
    %v146 = vld [vmem:[#allocation7 + $0x118] sm:$0xff]
    %v147 = vld [vmem:[#allocation7 + $0x120] sm:$0xff]
    %v148 = vld [vmem:[#allocation7 + $0x128] sm:$0xff]
    %v149 = vld [vmem:[#allocation7 + $0x130] sm:$0xff]
    %v150 = vld [vmem:[#allocation7 + $0x138] sm:$0xff]
    %v151 = vld [vmem:[#allocation7 + $0x140] sm:$0xff]
    %v152 = vld [vmem:[#allocation7 + $0x148] sm:$0xff]
    %v153 = vld [vmem:[#allocation7 + $0x150] sm:$0xff]
    %v154 = vld [vmem:[#allocation7 + $0x158] sm:$0xff]
    %v155 = vld [vmem:[#allocation7 + $0x160] sm:$0xff]
    %v156 = vld [vmem:[#allocation7 + $0x168] sm:$0xff]
    %v157 = vld [vmem:[#allocation7 + $0x170] sm:$0xff]
    %v158 = vld [vmem:[#allocation7 + $0x178] sm:$0xff]
    %v159 = vld [vmem:[#allocation7 + $0x180] sm:$0xff]
    %v160 = vld [vmem:[#allocation7 + $0x188] sm:$0xff]
    %v161 = vld [vmem:[#allocation7 + $0x190] sm:$0xff]
    %v162 = vld [vmem:[#allocation7 + $0x198] sm:$0xff]
    %v163 = vld [vmem:[#allocation7 + $0x1a0] sm:$0xff]
    %v164 = vld [vmem:[#allocation7 + $0x1a8] sm:$0xff]
    %v165 = vld [vmem:[#allocation7 + $0x1b0] sm:$0xff]
    %v166 = vld [vmem:[#allocation7 + $0x1b8] sm:$0xff]
    %v167 = vld [vmem:[#allocation7 + $0x1c0] sm:$0xff]
    %v168 = vld [vmem:[#allocation7 + $0x1c8] sm:$0xff]
    %v169 = vld [vmem:[#allocation7 + $0x1d0] sm:$0xff]
    %v170 = vld [vmem:[#allocation7 + $0x1d8] sm:$0xff]
    %v171 = vld [vmem:[#allocation7 + $0x1e0] sm:$0xff]
    %v172 = vld [vmem:[#allocation7 + $0x1e8] sm:$0xff]
    %v173 = vld [vmem:[#allocation7 + $0x1f0] sm:$0xff]
    %v174 = vld [vmem:[#allocation7 + $0x1f8] sm:$0xff]
    %v175 = vlaneseq
    %v176 = vshrl.u32 %v175, 7
    %v177 = vsub.s32 0, %v176
    %v178 = vrot.slane %v89, %v177
    %v179 = vlaneseq
    %v180 = vshrl.u32 %v179, 7
    %v181 = vsub.s32 0, %v180
    %v182 = vrot.slane %v90, %v181
    %183 = vmatprep.subr.mxu0 %v112
    %184 = vmatpush1.msra.mxu0 %v111
    %185 = vmatprep.subr.mxu0 %v114
    %186 = vmatpush1.msra.mxu0 %v113
    %187 = vmatprep.subr.mxu0 %v116
    %188 = vmatpush1.msra.mxu0 %v115
    %189 = vmatprep.subr.mxu0 %v118
    %190 = vmatpush1.msra.mxu0 %v117
    %191 = vmatprep.subr.mxu0 %v120
    %192 = vmatpush1.msra.mxu0 %v119
    %193 = vmatprep.subr.mxu0 %v122
    %194 = vmatpush1.msra.mxu0 %v121
    %195 = vmatprep.subr.mxu0 %v124
    %196 = vmatpush1.msra.mxu0 %v123
    %197 = vmatprep.subr.mxu0 %v126
    %198 = vmatpush1.msra.mxu0 %v125
    %199 = vmatprep.subr.mxu0 %v128
    %200 = vmatpush1.msra.mxu0 %v127
    %201 = vmatprep.subr.mxu0 %v130
    %202 = vmatpush1.msra.mxu0 %v129
    %203 = vmatprep.subr.mxu0 %v132
    %204 = vmatpush1.msra.mxu0 %v131
    %205 = vmatprep.subr.mxu0 %v134
    %206 = vmatpush1.msra.mxu0 %v133
    %207 = vmatprep.subr.mxu0 %v136
    %208 = vmatpush1.msra.mxu0 %v135
    %209 = vmatprep.subr.mxu0 %v138
    %210 = vmatpush1.msra.mxu0 %v137
    %211 = vmatprep.subr.mxu0 %v140
    %212 = vmatpush1.msra.mxu0 %v139
    %213 = vmatprep.subr.mxu0 %v142
    %214 = vmatpush1.msra.mxu0 %v141
    %215 = vmatprep.subr.mxu0 %v144
    %216 = vmatpush1.msra.mxu0 %v143
    %217 = vmatprep.subr.mxu0 %v146
    %218 = vmatpush1.msra.mxu0 %v145
    %219 = vmatprep.subr.mxu0 %v148
    %220 = vmatpush1.msra.mxu0 %v147
    %221 = vmatprep.subr.mxu0 %v150
    %222 = vmatpush1.msra.mxu0 %v149
    %223 = vmatprep.subr.mxu0 %v152
    %224 = vmatpush1.msra.mxu0 %v151
    %225 = vmatprep.subr.mxu0 %v154
    %226 = vmatpush1.msra.mxu0 %v153
    %227 = vmatprep.subr.mxu0 %v156
    %228 = vmatpush1.msra.mxu0 %v155
    %229 = vmatprep.subr.mxu0 %v158
    %230 = vmatpush1.msra.mxu0 %v157
    %231 = vmatprep.subr.mxu0 %v160
    %232 = vmatpush1.msra.mxu0 %v159
    %233 = vmatprep.subr.mxu0 %v162
    %234 = vmatpush1.msra.mxu0 %v161
    %235 = vmatprep.subr.mxu0 %v164
    %236 = vmatpush1.msra.mxu0 %v163
    %237 = vmatprep.subr.mxu0 %v166
    %238 = vmatpush1.msra.mxu0 %v165
    %239 = vmatprep.subr.mxu0 %v168
    %240 = vmatpush1.msra.mxu0 %v167
    %241 = vmatprep.subr.mxu0 %v170
    %242 = vmatpush1.msra.mxu0 %v169
    %243 = vmatprep.subr.mxu0 %v172
    %244 = vmatpush1.msra.mxu0 %v171
    %245 = vmatprep.subr.mxu0 %v174
    %246 = vmatpush1.msra.mxu0 %v173
    %247 = vmatprep.mubr.f32.mxu0 %v110
    %248 = vmatmul.mubr.f32.gmra.mrb[0].mxu0 %v109
    %v249 = vpop.f32.mrb[0].mxu0
    %v250 = vadd.f32 %v178, %v249
    %v251 = vpop.f32.mrb[0].mxu0
    %v252 = vadd.f32 %v182, %v251
    %253 = vdwg.mxu0
    %v254 = vmax.f32 %v250, 0.0
    %v255 = vmax.f32 %v252, 0.0
    %s256 = scalar_lea.vmem [#allocation7], 512
    %v257 = vld [vmem:[%s256] sm:$0xff]
    %v258 = vld [vmem:[%s256 + $0x8] sm:$0xff]
    %v259 = vld [vmem:[%s256 + $0x10] sm:$0xff]
    %v260 = vld [vmem:[%s256 + $0x18] sm:$0xff]
    %v261 = vld [vmem:[%s256 + $0x20] sm:$0xff]
    %v262 = vld [vmem:[%s256 + $0x28] sm:$0xff]
    %v263 = vld [vmem:[%s256 + $0x30] sm:$0xff]
    %v264 = vld [vmem:[%s256 + $0x38] sm:$0xff]
    %v265 = vld [vmem:[%s256 + $0x40] sm:$0xff]
    %v266 = vld [vmem:[%s256 + $0x48] sm:$0xff]
    %v267 = vld [vmem:[%s256 + $0x50] sm:$0xff]
    %v268 = vld [vmem:[%s256 + $0x58] sm:$0xff]
    %v269 = vld [vmem:[%s256 + $0x60] sm:$0xff]
    %v270 = vld [vmem:[%s256 + $0x68] sm:$0xff]
    %v271 = vld [vmem:[%s256 + $0x70] sm:$0xff]
    %v272 = vld [vmem:[%s256 + $0x78] sm:$0xff]
    %v273 = vld [vmem:[%s256 + $0x80] sm:$0xff]
    %v274 = vld [vmem:[%s256 + $0x88] sm:$0xff]
    %v275 = vld [vmem:[%s256 + $0x90] sm:$0xff]
    %v276 = vld [vmem:[%s256 + $0x98] sm:$0xff]
    %v277 = vld [vmem:[%s256 + $0xa0] sm:$0xff]
    %v278 = vld [vmem:[%s256 + $0xa8] sm:$0xff]
    %v279 = vld [vmem:[%s256 + $0xb0] sm:$0xff]
    %v280 = vld [vmem:[%s256 + $0xb8] sm:$0xff]
    %v281 = vld [vmem:[%s256 + $0xc0] sm:$0xff]
    %v282 = vld [vmem:[%s256 + $0xc8] sm:$0xff]
    %v283 = vld [vmem:[%s256 + $0xd0] sm:$0xff]
    %v284 = vld [vmem:[%s256 + $0xd8] sm:$0xff]
    %v285 = vld [vmem:[%s256 + $0xe0] sm:$0xff]
    %v286 = vld [vmem:[%s256 + $0xe8] sm:$0xff]
    %v287 = vld [vmem:[%s256 + $0xf0] sm:$0xff]
    %v288 = vld [vmem:[%s256 + $0xf8] sm:$0xff]
    %v289 = vld [vmem:[%s256 + $0x100] sm:$0xff]
    %v290 = vld [vmem:[%s256 + $0x108] sm:$0xff]
    %v291 = vld [vmem:[%s256 + $0x110] sm:$0xff]
    %v292 = vld [vmem:[%s256 + $0x118] sm:$0xff]
    %v293 = vld [vmem:[%s256 + $0x120] sm:$0xff]
    %v294 = vld [vmem:[%s256 + $0x128] sm:$0xff]
    %v295 = vld [vmem:[%s256 + $0x130] sm:$0xff]
    %v296 = vld [vmem:[%s256 + $0x138] sm:$0xff]
    %v297 = vld [vmem:[%s256 + $0x140] sm:$0xff]
    %v298 = vld [vmem:[%s256 + $0x148] sm:$0xff]
    %v299 = vld [vmem:[%s256 + $0x150] sm:$0xff]
    %v300 = vld [vmem:[%s256 + $0x158] sm:$0xff]
    %v301 = vld [vmem:[%s256 + $0x160] sm:$0xff]
    %v302 = vld [vmem:[%s256 + $0x168] sm:$0xff]
    %v303 = vld [vmem:[%s256 + $0x170] sm:$0xff]
    %v304 = vld [vmem:[%s256 + $0x178] sm:$0xff]
    %v305 = vld [vmem:[%s256 + $0x180] sm:$0xff]
    %v306 = vld [vmem:[%s256 + $0x188] sm:$0xff]
    %v307 = vld [vmem:[%s256 + $0x190] sm:$0xff]
    %v308 = vld [vmem:[%s256 + $0x198] sm:$0xff]
    %v309 = vld [vmem:[%s256 + $0x1a0] sm:$0xff]
    %v310 = vld [vmem:[%s256 + $0x1a8] sm:$0xff]
    %v311 = vld [vmem:[%s256 + $0x1b0] sm:$0xff]
    %v312 = vld [vmem:[%s256 + $0x1b8] sm:$0xff]
    %v313 = vld [vmem:[%s256 + $0x1c0] sm:$0xff]
    %v314 = vld [vmem:[%s256 + $0x1c8] sm:$0xff]
    %v315 = vld [vmem:[%s256 + $0x1d0] sm:$0xff]
    %v316 = vld [vmem:[%s256 + $0x1d8] sm:$0xff]
    %v317 = vld [vmem:[%s256 + $0x1e0] sm:$0xff]
    %v318 = vld [vmem:[%s256 + $0x1e8] sm:$0xff]
    %v319 = vld [vmem:[%s256 + $0x1f0] sm:$0xff]
    %v320 = vld [vmem:[%s256 + $0x1f8] sm:$0xff]
    %v321 = vlaneseq
    %v322 = vshrl.u32 %v321, 7
    %v323 = vsub.s32 1, %v322
    %v324 = vrot.slane %v89, %v323
    %v325 = vlaneseq
    %v326 = vshrl.u32 %v325, 7
    %v327 = vsub.s32 1, %v326
    %v328 = vrot.slane %v90, %v327
    %329 = vmatprep.subr.mxu0 %v258
    %330 = vmatpush1.msra.mxu0 %v257
    %331 = vmatprep.subr.mxu0 %v260
    %332 = vmatpush1.msra.mxu0 %v259
    %333 = vmatprep.subr.mxu0 %v262
    %334 = vmatpush1.msra.mxu0 %v261
    %335 = vmatprep.subr.mxu0 %v264
    %336 = vmatpush1.msra.mxu0 %v263
    %337 = vmatprep.subr.mxu0 %v266
    %338 = vmatpush1.msra.mxu0 %v265
    %339 = vmatprep.subr.mxu0 %v268
    %340 = vmatpush1.msra.mxu0 %v267
    %341 = vmatprep.subr.mxu0 %v270
    %342 = vmatpush1.msra.mxu0 %v269
    %343 = vmatprep.subr.mxu0 %v272
    %344 = vmatpush1.msra.mxu0 %v271
    %345 = vmatprep.subr.mxu0 %v274
    %346 = vmatpush1.msra.mxu0 %v273
    %347 = vmatprep.subr.mxu0 %v276
    %348 = vmatpush1.msra.mxu0 %v275
    %349 = vmatprep.subr.mxu0 %v278
    %350 = vmatpush1.msra.mxu0 %v277
    %351 = vmatprep.subr.mxu0 %v280
    %352 = vmatpush1.msra.mxu0 %v279
    %353 = vmatprep.subr.mxu0 %v282
    %354 = vmatpush1.msra.mxu0 %v281
    %355 = vmatprep.subr.mxu0 %v284
    %356 = vmatpush1.msra.mxu0 %v283
    %357 = vmatprep.subr.mxu0 %v286
    %358 = vmatpush1.msra.mxu0 %v285
    %359 = vmatprep.subr.mxu0 %v288
    %360 = vmatpush1.msra.mxu0 %v287
    %361 = vmatprep.subr.mxu0 %v290
    %362 = vmatpush1.msra.mxu0 %v289
    %363 = vmatprep.subr.mxu0 %v292
    %364 = vmatpush1.msra.mxu0 %v291
    %365 = vmatprep.subr.mxu0 %v294
    %366 = vmatpush1.msra.mxu0 %v293
    %367 = vmatprep.subr.mxu0 %v296
    %368 = vmatpush1.msra.mxu0 %v295
    %369 = vmatprep.subr.mxu0 %v298
    %370 = vmatpush1.msra.mxu0 %v297
    %371 = vmatprep.subr.mxu0 %v300
    %372 = vmatpush1.msra.mxu0 %v299
    %373 = vmatprep.subr.mxu0 %v302
    %374 = vmatpush1.msra.mxu0 %v301
    %375 = vmatprep.subr.mxu0 %v304
    %376 = vmatpush1.msra.mxu0 %v303
    %377 = vmatprep.subr.mxu0 %v306
    %378 = vmatpush1.msra.mxu0 %v305
    %379 = vmatprep.subr.mxu0 %v308
    %380 = vmatpush1.msra.mxu0 %v307
    %381 = vmatprep.subr.mxu0 %v310
    %382 = vmatpush1.msra.mxu0 %v309
    %383 = vmatprep.subr.mxu0 %v312
    %384 = vmatpush1.msra.mxu0 %v311
    %385 = vmatprep.subr.mxu0 %v314
    %386 = vmatpush1.msra.mxu0 %v313
    %387 = vmatprep.subr.mxu0 %v316
    %388 = vmatpush1.msra.mxu0 %v315
    %389 = vmatprep.subr.mxu0 %v318
    %390 = vmatpush1.msra.mxu0 %v317
    %391 = vmatprep.subr.mxu0 %v320
    %392 = vmatpush1.msra.mxu0 %v319
    %393 = vmatprep.mubr.f32.mxu0 %v255
    %394 = vmatmul.mubr.f32.gmra.mrb[0].mxu0 %v254
    %v395 = vpop.f32.mrb[0].mxu0
    %v396 = vadd.f32 %v324, %v395
    %v397 = vpop.f32.mrb[0].mxu0
    %v398 = vadd.f32 %v328, %v397
    %399 = vdwg.mxu0
    %v400 = vmax.f32 %v396, 0.0
    %v401 = vmax.f32 %v398, 0.0
    %s402 = scalar_lea.vmem [#allocation7], 1024
    %v403 = vld [vmem:[%s402] sm:$0xff]
    %v404 = vld [vmem:[%s402 + $0x8] sm:$0xff]
    %v405 = vld [vmem:[%s402 + $0x10] sm:$0xff]
    %v406 = vld [vmem:[%s402 + $0x18] sm:$0xff]
    %v407 = vld [vmem:[%s402 + $0x20] sm:$0xff]
    %v408 = vld [vmem:[%s402 + $0x28] sm:$0xff]
    %v409 = vld [vmem:[%s402 + $0x30] sm:$0xff]
    %v410 = vld [vmem:[%s402 + $0x38] sm:$0xff]
    %v411 = vld [vmem:[%s402 + $0x40] sm:$0xff]
    %v412 = vld [vmem:[%s402 + $0x48] sm:$0xff]
    %v413 = vld [vmem:[%s402 + $0x50] sm:$0xff]
    %v414 = vld [vmem:[%s402 + $0x58] sm:$0xff]
    %v415 = vld [vmem:[%s402 + $0x60] sm:$0xff]
    %v416 = vld [vmem:[%s402 + $0x68] sm:$0xff]
    %v417 = vld [vmem:[%s402 + $0x70] sm:$0xff]
    %v418 = vld [vmem:[%s402 + $0x78] sm:$0xff]
    %v419 = vld [vmem:[%s402 + $0x80] sm:$0xff]
    %v420 = vld [vmem:[%s402 + $0x88] sm:$0xff]
    %v421 = vld [vmem:[%s402 + $0x90] sm:$0xff]
    %v422 = vld [vmem:[%s402 + $0x98] sm:$0xff]
    %v423 = vld [vmem:[%s402 + $0xa0] sm:$0xff]
    %v424 = vld [vmem:[%s402 + $0xa8] sm:$0xff]
    %v425 = vld [vmem:[%s402 + $0xb0] sm:$0xff]
    %v426 = vld [vmem:[%s402 + $0xb8] sm:$0xff]
    %v427 = vld [vmem:[%s402 + $0xc0] sm:$0xff]
    %v428 = vld [vmem:[%s402 + $0xc8] sm:$0xff]
    %v429 = vld [vmem:[%s402 + $0xd0] sm:$0xff]
    %v430 = vld [vmem:[%s402 + $0xd8] sm:$0xff]
    %v431 = vld [vmem:[%s402 + $0xe0] sm:$0xff]
    %v432 = vld [vmem:[%s402 + $0xe8] sm:$0xff]
    %v433 = vld [vmem:[%s402 + $0xf0] sm:$0xff]
    %v434 = vld [vmem:[%s402 + $0xf8] sm:$0xff]
    %v435 = vld [vmem:[%s402 + $0x100] sm:$0xff]
    %v436 = vld [vmem:[%s402 + $0x108] sm:$0xff]
    %v437 = vld [vmem:[%s402 + $0x110] sm:$0xff]
    %v438 = vld [vmem:[%s402 + $0x118] sm:$0xff]
    %v439 = vld [vmem:[%s402 + $0x120] sm:$0xff]
    %v440 = vld [vmem:[%s402 + $0x128] sm:$0xff]
    %v441 = vld [vmem:[%s402 + $0x130] sm:$0xff]
    %v442 = vld [vmem:[%s402 + $0x138] sm:$0xff]
    %v443 = vld [vmem:[%s402 + $0x140] sm:$0xff]
    %v444 = vld [vmem:[%s402 + $0x148] sm:$0xff]
    %v445 = vld [vmem:[%s402 + $0x150] sm:$0xff]
    %v446 = vld [vmem:[%s402 + $0x158] sm:$0xff]
    %v447 = vld [vmem:[%s402 + $0x160] sm:$0xff]
    %v448 = vld [vmem:[%s402 + $0x168] sm:$0xff]
    %v449 = vld [vmem:[%s402 + $0x170] sm:$0xff]
    %v450 = vld [vmem:[%s402 + $0x178] sm:$0xff]
    %v451 = vld [vmem:[%s402 + $0x180] sm:$0xff]
    %v452 = vld [vmem:[%s402 + $0x188] sm:$0xff]
    %v453 = vld [vmem:[%s402 + $0x190] sm:$0xff]
    %v454 = vld [vmem:[%s402 + $0x198] sm:$0xff]
    %v455 = vld [vmem:[%s402 + $0x1a0] sm:$0xff]
    %v456 = vld [vmem:[%s402 + $0x1a8] sm:$0xff]
    %v457 = vld [vmem:[%s402 + $0x1b0] sm:$0xff]
    %v458 = vld [vmem:[%s402 + $0x1b8] sm:$0xff]
    %v459 = vld [vmem:[%s402 + $0x1c0] sm:$0xff]
    %v460 = vld [vmem:[%s402 + $0x1c8] sm:$0xff]
    %v461 = vld [vmem:[%s402 + $0x1d0] sm:$0xff]
    %v462 = vld [vmem:[%s402 + $0x1d8] sm:$0xff]
    %v463 = vld [vmem:[%s402 + $0x1e0] sm:$0xff]
    %v464 = vld [vmem:[%s402 + $0x1e8] sm:$0xff]
    %v465 = vld [vmem:[%s402 + $0x1f0] sm:$0xff]
    %v466 = vld [vmem:[%s402 + $0x1f8] sm:$0xff]
    %v467 = vlaneseq
    %v468 = vshrl.u32 %v467, 7
    %v469 = vsub.s32 2, %v468
    %v470 = vrot.slane %v89, %v469
    %v471 = vlaneseq
    %v472 = vshrl.u32 %v471, 7
    %v473 = vsub.s32 2, %v472
    %v474 = vrot.slane %v90, %v473
    %475 = vmatprep.subr.mxu0 %v404
    %476 = vmatpush1.msra.mxu0 %v403
    %477 = vmatprep.subr.mxu0 %v406
    %478 = vmatpush1.msra.mxu0 %v405
    %479 = vmatprep.subr.mxu0 %v408
    %480 = vmatpush1.msra.mxu0 %v407
    %481 = vmatprep.subr.mxu0 %v410
    %482 = vmatpush1.msra.mxu0 %v409
    %483 = vmatprep.subr.mxu0 %v412
    %484 = vmatpush1.msra.mxu0 %v411
    %485 = vmatprep.subr.mxu0 %v414
    %486 = vmatpush1.msra.mxu0 %v413
    %487 = vmatprep.subr.mxu0 %v416
    %488 = vmatpush1.msra.mxu0 %v415
    %489 = vmatprep.subr.mxu0 %v418
    %490 = vmatpush1.msra.mxu0 %v417
    %491 = vmatprep.subr.mxu0 %v420
    %492 = vmatpush1.msra.mxu0 %v419
    %493 = vmatprep.subr.mxu0 %v422
    %494 = vmatpush1.msra.mxu0 %v421
    %495 = vmatprep.subr.mxu0 %v424
    %496 = vmatpush1.msra.mxu0 %v423
    %497 = vmatprep.subr.mxu0 %v426
    %498 = vmatpush1.msra.mxu0 %v425
    %499 = vmatprep.subr.mxu0 %v428
    %500 = vmatpush1.msra.mxu0 %v427
    %501 = vmatprep.subr.mxu0 %v430
    %502 = vmatpush1.msra.mxu0 %v429
    %503 = vmatprep.subr.mxu0 %v432
    %504 = vmatpush1.msra.mxu0 %v431
    %505 = vmatprep.subr.mxu0 %v434
    %506 = vmatpush1.msra.mxu0 %v433
    %507 = vmatprep.subr.mxu0 %v436
    %508 = vmatpush1.msra.mxu0 %v435
    %509 = vmatprep.subr.mxu0 %v438
    %510 = vmatpush1.msra.mxu0 %v437
    %511 = vmatprep.subr.mxu0 %v440
    %512 = vmatpush1.msra.mxu0 %v439
    %513 = vmatprep.subr.mxu0 %v442
    %514 = vmatpush1.msra.mxu0 %v441
    %515 = vmatprep.subr.mxu0 %v444
    %516 = vmatpush1.msra.mxu0 %v443
    %517 = vmatprep.subr.mxu0 %v446
    %518 = vmatpush1.msra.mxu0 %v445
    %519 = vmatprep.subr.mxu0 %v448
    %520 = vmatpush1.msra.mxu0 %v447
    %521 = vmatprep.subr.mxu0 %v450
    %522 = vmatpush1.msra.mxu0 %v449
    %523 = vmatprep.subr.mxu0 %v452
    %524 = vmatpush1.msra.mxu0 %v451
    %525 = vmatprep.subr.mxu0 %v454
    %526 = vmatpush1.msra.mxu0 %v453
    %527 = vmatprep.subr.mxu0 %v456
    %528 = vmatpush1.msra.mxu0 %v455
    %529 = vmatprep.subr.mxu0 %v458
    %530 = vmatpush1.msra.mxu0 %v457
    %531 = vmatprep.subr.mxu0 %v460
    %532 = vmatpush1.msra.mxu0 %v459
    %533 = vmatprep.subr.mxu0 %v462
    %534 = vmatpush1.msra.mxu0 %v461
    %535 = vmatprep.subr.mxu0 %v464
    %536 = vmatpush1.msra.mxu0 %v463
    %537 = vmatprep.subr.mxu0 %v466
    %538 = vmatpush1.msra.mxu0 %v465
    %539 = vmatprep.mubr.f32.mxu0 %v401
    %540 = vmatmul.mubr.f32.gmra.mrb[0].mxu0 %v400
    %v541 = vpop.f32.mrb[0].mxu0
    %v542 = vadd.f32 %v470, %v541
    %v543 = vpop.f32.mrb[0].mxu0
    %v544 = vadd.f32 %v474, %v543
    %545 = vdwg.mxu0
    %v546 = vlaneseq
    %v547 = vshrl.u32 %v546, 7
    %v548 = vsub.s32 2, %v547
    %v549 = vrot.slane %v87, %v548
    %v550 = vlaneseq
    %v551 = vshrl.u32 %v550, 7
    %v552 = vsub.s32 2, %v551
    %v553 = vrot.slane %v88, %v552
    %v554 = vmul.f32 %v542, %v549
    %v555 = vmul.f32 %v544, %v553
    %v556 = vlaneseq
    %v557 = vshrl.u32 %v556, 7
    %v558 = vsub.s32 3, %v557
    %v559 = vrot.slane %v87, %v558
    %v560 = vlaneseq
    %v561 = vshrl.u32 %v560, 7
    %v562 = vsub.s32 3, %v561
    %v563 = vrot.slane %v88, %v562
    %v564 = vadd.f32 %v554, %v559
    %v565 = vadd.f32 %v555, %v563
    %v566 = vadd.f32 %v85, %v564
    %v567 = vadd.f32 %v86, %v565
    %v568 = vlaneseq
    %v569 = vshrl.u32 %v568, 7
    %v570 = vsub.s32 4, %v569
    %v571 = vrot.slane %v87, %v570
    %v572 = vlaneseq
    %v573 = vshrl.u32 %v572, 7
    %v574 = vsub.s32 4, %v573
    %v575 = vrot.slane %v88, %v574
    %v576 = vmul.f32 %v566, %v571
    %v577 = vmul.f32 %v567, %v575
    %v578 = vlaneseq
    %v579 = vshrl.u32 %v578, 7
    %v580 = vsub.s32 5, %v579
    %v581 = vrot.slane %v87, %v580
    %v582 = vlaneseq
    %v583 = vshrl.u32 %v582, 7
    %v584 = vsub.s32 5, %v583
    %v585 = vrot.slane %v88, %v584
    %v586 = vadd.f32 %v576, %v581
    %v587 = vadd.f32 %v577, %v585
    %s588 = scalar_lea.vmem [#allocation7], 1536
    %v589 = vld [vmem:[%s588] sm:$0xff]
    %v590 = vld [vmem:[%s588 + $0x8] sm:$0xff]
    %v591 = vld [vmem:[%s588 + $0x10] sm:$0xff]
    %v592 = vld [vmem:[%s588 + $0x18] sm:$0xff]
    %v593 = vld [vmem:[%s588 + $0x20] sm:$0xff]
    %v594 = vld [vmem:[%s588 + $0x28] sm:$0xff]
    %v595 = vld [vmem:[%s588 + $0x30] sm:$0xff]
    %v596 = vld [vmem:[%s588 + $0x38] sm:$0xff]
    %v597 = vld [vmem:[%s588 + $0x40] sm:$0xff]
    %v598 = vld [vmem:[%s588 + $0x48] sm:$0xff]
    %v599 = vld [vmem:[%s588 + $0x50] sm:$0xff]
    %v600 = vld [vmem:[%s588 + $0x58] sm:$0xff]
    %v601 = vld [vmem:[%s588 + $0x60] sm:$0xff]
    %v602 = vld [vmem:[%s588 + $0x68] sm:$0xff]
    %v603 = vld [vmem:[%s588 + $0x70] sm:$0xff]
    %v604 = vld [vmem:[%s588 + $0x78] sm:$0xff]
    %v605 = vld [vmem:[%s588 + $0x80] sm:$0xff]
    %v606 = vld [vmem:[%s588 + $0x88] sm:$0xff]
    %v607 = vld [vmem:[%s588 + $0x90] sm:$0xff]
    %v608 = vld [vmem:[%s588 + $0x98] sm:$0xff]
    %v609 = vld [vmem:[%s588 + $0xa0] sm:$0xff]
    %v610 = vld [vmem:[%s588 + $0xa8] sm:$0xff]
    %v611 = vld [vmem:[%s588 + $0xb0] sm:$0xff]
    %v612 = vld [vmem:[%s588 + $0xb8] sm:$0xff]
    %v613 = vld [vmem:[%s588 + $0xc0] sm:$0xff]
    %v614 = vld [vmem:[%s588 + $0xc8] sm:$0xff]
    %v615 = vld [vmem:[%s588 + $0xd0] sm:$0xff]
    %v616 = vld [vmem:[%s588 + $0xd8] sm:$0xff]
    %v617 = vld [vmem:[%s588 + $0xe0] sm:$0xff]
    %v618 = vld [vmem:[%s588 + $0xe8] sm:$0xff]
    %v619 = vld [vmem:[%s588 + $0xf0] sm:$0xff]
    %v620 = vld [vmem:[%s588 + $0xf8] sm:$0xff]
    %v621 = vld [vmem:[%s588 + $0x100] sm:$0xff]
    %v622 = vld [vmem:[%s588 + $0x108] sm:$0xff]
    %v623 = vld [vmem:[%s588 + $0x110] sm:$0xff]
    %v624 = vld [vmem:[%s588 + $0x118] sm:$0xff]
    %v625 = vld [vmem:[%s588 + $0x120] sm:$0xff]
    %v626 = vld [vmem:[%s588 + $0x128] sm:$0xff]
    %v627 = vld [vmem:[%s588 + $0x130] sm:$0xff]
    %v628 = vld [vmem:[%s588 + $0x138] sm:$0xff]
    %v629 = vld [vmem:[%s588 + $0x140] sm:$0xff]
    %v630 = vld [vmem:[%s588 + $0x148] sm:$0xff]
    %v631 = vld [vmem:[%s588 + $0x150] sm:$0xff]
    %v632 = vld [vmem:[%s588 + $0x158] sm:$0xff]
    %v633 = vld [vmem:[%s588 + $0x160] sm:$0xff]
    %v634 = vld [vmem:[%s588 + $0x168] sm:$0xff]
    %v635 = vld [vmem:[%s588 + $0x170] sm:$0xff]
    %v636 = vld [vmem:[%s588 + $0x178] sm:$0xff]
    %v637 = vld [vmem:[%s588 + $0x180] sm:$0xff]
    %v638 = vld [vmem:[%s588 + $0x188] sm:$0xff]
    %v639 = vld [vmem:[%s588 + $0x190] sm:$0xff]
    %v640 = vld [vmem:[%s588 + $0x198] sm:$0xff]
    %v641 = vld [vmem:[%s588 + $0x1a0] sm:$0xff]
    %v642 = vld [vmem:[%s588 + $0x1a8] sm:$0xff]
    %v643 = vld [vmem:[%s588 + $0x1b0] sm:$0xff]
    %v644 = vld [vmem:[%s588 + $0x1b8] sm:$0xff]
    %v645 = vld [vmem:[%s588 + $0x1c0] sm:$0xff]
    %v646 = vld [vmem:[%s588 + $0x1c8] sm:$0xff]
    %v647 = vld [vmem:[%s588 + $0x1d0] sm:$0xff]
    %v648 = vld [vmem:[%s588 + $0x1d8] sm:$0xff]
    %v649 = vld [vmem:[%s588 + $0x1e0] sm:$0xff]
    %v650 = vld [vmem:[%s588 + $0x1e8] sm:$0xff]
    %v651 = vld [vmem:[%s588 + $0x1f0] sm:$0xff]
    %v652 = vld [vmem:[%s588 + $0x1f8] sm:$0xff]
    %v653 = vlaneseq
    %v654 = vshrl.u32 %v653, 7
    %v655 = vsub.s32 3, %v654
    %v656 = vrot.slane %v89, %v655
    %v657 = vlaneseq
    %v658 = vshrl.u32 %v657, 7
    %v659 = vsub.s32 3, %v658
    %v660 = vrot.slane %v90, %v659
    %661 = vmatprep.subr.mxu0 %v590
    %662 = vmatpush1.msra.mxu0 %v589
    %663 = vmatprep.subr.mxu0 %v592
    %664 = vmatpush1.msra.mxu0 %v591
    %665 = vmatprep.subr.mxu0 %v594
    %666 = vmatpush1.msra.mxu0 %v593
    %667 = vmatprep.subr.mxu0 %v596
    %668 = vmatpush1.msra.mxu0 %v595
    %669 = vmatprep.subr.mxu0 %v598
    %670 = vmatpush1.msra.mxu0 %v597
    %671 = vmatprep.subr.mxu0 %v600
    %672 = vmatpush1.msra.mxu0 %v599
    %673 = vmatprep.subr.mxu0 %v602
    %674 = vmatpush1.msra.mxu0 %v601
    %675 = vmatprep.subr.mxu0 %v604
    %676 = vmatpush1.msra.mxu0 %v603
    %677 = vmatprep.subr.mxu0 %v606
    %678 = vmatpush1.msra.mxu0 %v605
    %679 = vmatprep.subr.mxu0 %v608
    %680 = vmatpush1.msra.mxu0 %v607
    %681 = vmatprep.subr.mxu0 %v610
    %682 = vmatpush1.msra.mxu0 %v609
    %683 = vmatprep.subr.mxu0 %v612
    %684 = vmatpush1.msra.mxu0 %v611
    %685 = vmatprep.subr.mxu0 %v614
    %686 = vmatpush1.msra.mxu0 %v613
    %687 = vmatprep.subr.mxu0 %v616
    %688 = vmatpush1.msra.mxu0 %v615
    %689 = vmatprep.subr.mxu0 %v618
    %690 = vmatpush1.msra.mxu0 %v617
    %691 = vmatprep.subr.mxu0 %v620
    %692 = vmatpush1.msra.mxu0 %v619
    %693 = vmatprep.subr.mxu0 %v622
    %694 = vmatpush1.msra.mxu0 %v621
    %695 = vmatprep.subr.mxu0 %v624
    %696 = vmatpush1.msra.mxu0 %v623
    %697 = vmatprep.subr.mxu0 %v626
    %698 = vmatpush1.msra.mxu0 %v625
    %699 = vmatprep.subr.mxu0 %v628
    %700 = vmatpush1.msra.mxu0 %v627
    %701 = vmatprep.subr.mxu0 %v630
    %702 = vmatpush1.msra.mxu0 %v629
    %703 = vmatprep.subr.mxu0 %v632
    %704 = vmatpush1.msra.mxu0 %v631
    %705 = vmatprep.subr.mxu0 %v634
    %706 = vmatpush1.msra.mxu0 %v633
    %707 = vmatprep.subr.mxu0 %v636
    %708 = vmatpush1.msra.mxu0 %v635
    %709 = vmatprep.subr.mxu0 %v638
    %710 = vmatpush1.msra.mxu0 %v637
    %711 = vmatprep.subr.mxu0 %v640
    %712 = vmatpush1.msra.mxu0 %v639
    %713 = vmatprep.subr.mxu0 %v642
    %714 = vmatpush1.msra.mxu0 %v641
    %715 = vmatprep.subr.mxu0 %v644
    %716 = vmatpush1.msra.mxu0 %v643
    %717 = vmatprep.subr.mxu0 %v646
    %718 = vmatpush1.msra.mxu0 %v645
    %719 = vmatprep.subr.mxu0 %v648
    %720 = vmatpush1.msra.mxu0 %v647
    %721 = vmatprep.subr.mxu0 %v650
    %722 = vmatpush1.msra.mxu0 %v649
    %723 = vmatprep.subr.mxu0 %v652
    %724 = vmatpush1.msra.mxu0 %v651
    %725 = vmatprep.mubr.f32.mxu0 %v587
    %726 = vmatmul.mubr.f32.gmra.mrb[0].mxu0 %v586
    %v727 = vpop.f32.mrb[0].mxu0
    %v728 = vadd.f32 %v656, %v727
    %v729 = vpop.f32.mrb[0].mxu0
    %v730 = vadd.f32 %v660, %v729
    %731 = vdwg.mxu0
    %v732 = vmax.f32 %v728, 0.0
    %v733 = vmax.f32 %v730, 0.0
    %s734 = scalar_lea.vmem [#allocation7], 2048
    %v735 = vld [vmem:[%s734] sm:$0xff]
    %v736 = vld [vmem:[%s734 + $0x8] sm:$0xff]
    %v737 = vld [vmem:[%s734 + $0x10] sm:$0xff]
    %v738 = vld [vmem:[%s734 + $0x18] sm:$0xff]
    %v739 = vld [vmem:[%s734 + $0x20] sm:$0xff]
    %v740 = vld [vmem:[%s734 + $0x28] sm:$0xff]
    %v741 = vld [vmem:[%s734 + $0x30] sm:$0xff]
    %v742 = vld [vmem:[%s734 + $0x38] sm:$0xff]
    %v743 = vld [vmem:[%s734 + $0x40] sm:$0xff]
    %v744 = vld [vmem:[%s734 + $0x48] sm:$0xff]
    %v745 = vld [vmem:[%s734 + $0x50] sm:$0xff]
    %v746 = vld [vmem:[%s734 + $0x58] sm:$0xff]
    %v747 = vld [vmem:[%s734 + $0x60] sm:$0xff]
    %v748 = vld [vmem:[%s734 + $0x68] sm:$0xff]
    %v749 = vld [vmem:[%s734 + $0x70] sm:$0xff]
    %v750 = vld [vmem:[%s734 + $0x78] sm:$0xff]
    %v751 = vld [vmem:[%s734 + $0x80] sm:$0xff]
    %v752 = vld [vmem:[%s734 + $0x88] sm:$0xff]
    %v753 = vld [vmem:[%s734 + $0x90] sm:$0xff]
    %v754 = vld [vmem:[%s734 + $0x98] sm:$0xff]
    %v755 = vld [vmem:[%s734 + $0xa0] sm:$0xff]
    %v756 = vld [vmem:[%s734 + $0xa8] sm:$0xff]
    %v757 = vld [vmem:[%s734 + $0xb0] sm:$0xff]
    %v758 = vld [vmem:[%s734 + $0xb8] sm:$0xff]
    %v759 = vld [vmem:[%s734 + $0xc0] sm:$0xff]
    %v760 = vld [vmem:[%s734 + $0xc8] sm:$0xff]
    %v761 = vld [vmem:[%s734 + $0xd0] sm:$0xff]
    %v762 = vld [vmem:[%s734 + $0xd8] sm:$0xff]
    %v763 = vld [vmem:[%s734 + $0xe0] sm:$0xff]
    %v764 = vld [vmem:[%s734 + $0xe8] sm:$0xff]
    %v765 = vld [vmem:[%s734 + $0xf0] sm:$0xff]
    %v766 = vld [vmem:[%s734 + $0xf8] sm:$0xff]
    %v767 = vld [vmem:[%s734 + $0x100] sm:$0xff]
    %v768 = vld [vmem:[%s734 + $0x108] sm:$0xff]
    %v769 = vld [vmem:[%s734 + $0x110] sm:$0xff]
    %v770 = vld [vmem:[%s734 + $0x118] sm:$0xff]
    %v771 = vld [vmem:[%s734 + $0x120] sm:$0xff]
    %v772 = vld [vmem:[%s734 + $0x128] sm:$0xff]
    %v773 = vld [vmem:[%s734 + $0x130] sm:$0xff]
    %v774 = vld [vmem:[%s734 + $0x138] sm:$0xff]
    %v775 = vld [vmem:[%s734 + $0x140] sm:$0xff]
    %v776 = vld [vmem:[%s734 + $0x148] sm:$0xff]
    %v777 = vld [vmem:[%s734 + $0x150] sm:$0xff]
    %v778 = vld [vmem:[%s734 + $0x158] sm:$0xff]
    %v779 = vld [vmem:[%s734 + $0x160] sm:$0xff]
    %v780 = vld [vmem:[%s734 + $0x168] sm:$0xff]
    %v781 = vld [vmem:[%s734 + $0x170] sm:$0xff]
    %v782 = vld [vmem:[%s734 + $0x178] sm:$0xff]
    %v783 = vld [vmem:[%s734 + $0x180] sm:$0xff]
    %v784 = vld [vmem:[%s734 + $0x188] sm:$0xff]
    %v785 = vld [vmem:[%s734 + $0x190] sm:$0xff]
    %v786 = vld [vmem:[%s734 + $0x198] sm:$0xff]
    %v787 = vld [vmem:[%s734 + $0x1a0] sm:$0xff]
    %v788 = vld [vmem:[%s734 + $0x1a8] sm:$0xff]
    %v789 = vld [vmem:[%s734 + $0x1b0] sm:$0xff]
    %v790 = vld [vmem:[%s734 + $0x1b8] sm:$0xff]
    %v791 = vld [vmem:[%s734 + $0x1c0] sm:$0xff]
    %v792 = vld [vmem:[%s734 + $0x1c8] sm:$0xff]
    %v793 = vld [vmem:[%s734 + $0x1d0] sm:$0xff]
    %v794 = vld [vmem:[%s734 + $0x1d8] sm:$0xff]
    %v795 = vld [vmem:[%s734 + $0x1e0] sm:$0xff]
    %v796 = vld [vmem:[%s734 + $0x1e8] sm:$0xff]
    %v797 = vld [vmem:[%s734 + $0x1f0] sm:$0xff]
    %v798 = vld [vmem:[%s734 + $0x1f8] sm:$0xff]
    %v799 = vlaneseq
    %v800 = vshrl.u32 %v799, 7
    %v801 = vsub.s32 4, %v800
    %v802 = vrot.slane %v89, %v801
    %v803 = vlaneseq
    %v804 = vshrl.u32 %v803, 7
    %v805 = vsub.s32 4, %v804
    %v806 = vrot.slane %v90, %v805
    %807 = vmatprep.subr.mxu0 %v736
    %808 = vmatpush1.msra.mxu0 %v735
    %809 = vmatprep.subr.mxu0 %v738
    %810 = vmatpush1.msra.mxu0 %v737
    %811 = vmatprep.subr.mxu0 %v740
    %812 = vmatpush1.msra.mxu0 %v739
    %813 = vmatprep.subr.mxu0 %v742
    %814 = vmatpush1.msra.mxu0 %v741
    %815 = vmatprep.subr.mxu0 %v744
    %816 = vmatpush1.msra.mxu0 %v743
    %817 = vmatprep.subr.mxu0 %v746
    %818 = vmatpush1.msra.mxu0 %v745
    %819 = vmatprep.subr.mxu0 %v748
    %820 = vmatpush1.msra.mxu0 %v747
    %821 = vmatprep.subr.mxu0 %v750
    %822 = vmatpush1.msra.mxu0 %v749
    %823 = vmatprep.subr.mxu0 %v752
    %824 = vmatpush1.msra.mxu0 %v751
    %825 = vmatprep.subr.mxu0 %v754
    %826 = vmatpush1.msra.mxu0 %v753
    %827 = vmatprep.subr.mxu0 %v756
    %828 = vmatpush1.msra.mxu0 %v755
    %829 = vmatprep.subr.mxu0 %v758
    %830 = vmatpush1.msra.mxu0 %v757
    %831 = vmatprep.subr.mxu0 %v760
    %832 = vmatpush1.msra.mxu0 %v759
    %833 = vmatprep.subr.mxu0 %v762
    %834 = vmatpush1.msra.mxu0 %v761
    %835 = vmatprep.subr.mxu0 %v764
    %836 = vmatpush1.msra.mxu0 %v763
    %837 = vmatprep.subr.mxu0 %v766
    %838 = vmatpush1.msra.mxu0 %v765
    %839 = vmatprep.subr.mxu0 %v768
    %840 = vmatpush1.msra.mxu0 %v767
    %841 = vmatprep.subr.mxu0 %v770
    %842 = vmatpush1.msra.mxu0 %v769
    %843 = vmatprep.subr.mxu0 %v772
    %844 = vmatpush1.msra.mxu0 %v771
    %845 = vmatprep.subr.mxu0 %v774
    %846 = vmatpush1.msra.mxu0 %v773
    %847 = vmatprep.subr.mxu0 %v776
    %848 = vmatpush1.msra.mxu0 %v775
    %849 = vmatprep.subr.mxu0 %v778
    %850 = vmatpush1.msra.mxu0 %v777
    %851 = vmatprep.subr.mxu0 %v780
    %852 = vmatpush1.msra.mxu0 %v779
    %853 = vmatprep.subr.mxu0 %v782
    %854 = vmatpush1.msra.mxu0 %v781
    %855 = vmatprep.subr.mxu0 %v784
    %856 = vmatpush1.msra.mxu0 %v783
    %857 = vmatprep.subr.mxu0 %v786
    %858 = vmatpush1.msra.mxu0 %v785
    %859 = vmatprep.subr.mxu0 %v788
    %860 = vmatpush1.msra.mxu0 %v787
    %861 = vmatprep.subr.mxu0 %v790
    %862 = vmatpush1.msra.mxu0 %v789
    %863 = vmatprep.subr.mxu0 %v792
    %864 = vmatpush1.msra.mxu0 %v791
    %865 = vmatprep.subr.mxu0 %v794
    %866 = vmatpush1.msra.mxu0 %v793
    %867 = vmatprep.subr.mxu0 %v796
    %868 = vmatpush1.msra.mxu0 %v795
    %869 = vmatprep.subr.mxu0 %v798
    %870 = vmatpush1.msra.mxu0 %v797
    %871 = vmatprep.mubr.f32.mxu0 %v733
    %872 = vmatmul.mubr.f32.gmra.mrb[0].mxu0 %v732
    %v873 = vpop.f32.mrb[0].mxu0
    %v874 = vadd.f32 %v802, %v873
    %v875 = vpop.f32.mrb[0].mxu0
    %v876 = vadd.f32 %v806, %v875
    %877 = vdwg.mxu0
    %v878 = vmax.f32 %v874, 0.0
    %v879 = vmax.f32 %v876, 0.0
    %s880 = scalar_lea.vmem [#allocation7], 2560
    %v881 = vld [vmem:[%s880] sm:$0xff]
    %v882 = vld [vmem:[%s880 + $0x8] sm:$0xff]
    %v883 = vld [vmem:[%s880 + $0x10] sm:$0xff]
    %v884 = vld [vmem:[%s880 + $0x18] sm:$0xff]
    %v885 = vld [vmem:[%s880 + $0x20] sm:$0xff]
    %v886 = vld [vmem:[%s880 + $0x28] sm:$0xff]
    %v887 = vld [vmem:[%s880 + $0x30] sm:$0xff]
    %v888 = vld [vmem:[%s880 + $0x38] sm:$0xff]
    %v889 = vld [vmem:[%s880 + $0x40] sm:$0xff]
    %v890 = vld [vmem:[%s880 + $0x48] sm:$0xff]
    %v891 = vld [vmem:[%s880 + $0x50] sm:$0xff]
    %v892 = vld [vmem:[%s880 + $0x58] sm:$0xff]
    %v893 = vld [vmem:[%s880 + $0x60] sm:$0xff]
    %v894 = vld [vmem:[%s880 + $0x68] sm:$0xff]
    %v895 = vld [vmem:[%s880 + $0x70] sm:$0xff]
    %v896 = vld [vmem:[%s880 + $0x78] sm:$0xff]
    %v897 = vld [vmem:[%s880 + $0x80] sm:$0xff]
    %v898 = vld [vmem:[%s880 + $0x88] sm:$0xff]
    %v899 = vld [vmem:[%s880 + $0x90] sm:$0xff]
    %v900 = vld [vmem:[%s880 + $0x98] sm:$0xff]
    %v901 = vld [vmem:[%s880 + $0xa0] sm:$0xff]
    %v902 = vld [vmem:[%s880 + $0xa8] sm:$0xff]
    %v903 = vld [vmem:[%s880 + $0xb0] sm:$0xff]
    %v904 = vld [vmem:[%s880 + $0xb8] sm:$0xff]
    %v905 = vld [vmem:[%s880 + $0xc0] sm:$0xff]
    %v906 = vld [vmem:[%s880 + $0xc8] sm:$0xff]
    %v907 = vld [vmem:[%s880 + $0xd0] sm:$0xff]
    %v908 = vld [vmem:[%s880 + $0xd8] sm:$0xff]
    %v909 = vld [vmem:[%s880 + $0xe0] sm:$0xff]
    %v910 = vld [vmem:[%s880 + $0xe8] sm:$0xff]
    %v911 = vld [vmem:[%s880 + $0xf0] sm:$0xff]
    %v912 = vld [vmem:[%s880 + $0xf8] sm:$0xff]
    %v913 = vld [vmem:[%s880 + $0x100] sm:$0xff]
    %v914 = vld [vmem:[%s880 + $0x108] sm:$0xff]
    %v915 = vld [vmem:[%s880 + $0x110] sm:$0xff]
    %v916 = vld [vmem:[%s880 + $0x118] sm:$0xff]
    %v917 = vld [vmem:[%s880 + $0x120] sm:$0xff]
    %v918 = vld [vmem:[%s880 + $0x128] sm:$0xff]
    %v919 = vld [vmem:[%s880 + $0x130] sm:$0xff]
    %v920 = vld [vmem:[%s880 + $0x138] sm:$0xff]
    %v921 = vld [vmem:[%s880 + $0x140] sm:$0xff]
    %v922 = vld [vmem:[%s880 + $0x148] sm:$0xff]
    %v923 = vld [vmem:[%s880 + $0x150] sm:$0xff]
    %v924 = vld [vmem:[%s880 + $0x158] sm:$0xff]
    %v925 = vld [vmem:[%s880 + $0x160] sm:$0xff]
    %v926 = vld [vmem:[%s880 + $0x168] sm:$0xff]
    %v927 = vld [vmem:[%s880 + $0x170] sm:$0xff]
    %v928 = vld [vmem:[%s880 + $0x178] sm:$0xff]
    %v929 = vld [vmem:[%s880 + $0x180] sm:$0xff]
    %v930 = vld [vmem:[%s880 + $0x188] sm:$0xff]
    %v931 = vld [vmem:[%s880 + $0x190] sm:$0xff]
    %v932 = vld [vmem:[%s880 + $0x198] sm:$0xff]
    %v933 = vld [vmem:[%s880 + $0x1a0] sm:$0xff]
    %v934 = vld [vmem:[%s880 + $0x1a8] sm:$0xff]
    %v935 = vld [vmem:[%s880 + $0x1b0] sm:$0xff]
    %v936 = vld [vmem:[%s880 + $0x1b8] sm:$0xff]
    %v937 = vld [vmem:[%s880 + $0x1c0] sm:$0xff]
    %v938 = vld [vmem:[%s880 + $0x1c8] sm:$0xff]
    %v939 = vld [vmem:[%s880 + $0x1d0] sm:$0xff]
    %v940 = vld [vmem:[%s880 + $0x1d8] sm:$0xff]
    %v941 = vld [vmem:[%s880 + $0x1e0] sm:$0xff]
    %v942 = vld [vmem:[%s880 + $0x1e8] sm:$0xff]
    %v943 = vld [vmem:[%s880 + $0x1f0] sm:$0xff]
    %v944 = vld [vmem:[%s880 + $0x1f8] sm:$0xff]
    %v945 = vlaneseq
    %v946 = vshrl.u32 %v945, 7
    %v947 = vsub.s32 5, %v946
    %v948 = vrot.slane %v89, %v947
    %v949 = vlaneseq
    %v950 = vshrl.u32 %v949, 7
    %v951 = vsub.s32 5, %v950
    %v952 = vrot.slane %v90, %v951
    %953 = vmatprep.subr.mxu0 %v882
    %954 = vmatpush1.msra.mxu0 %v881
    %955 = vmatprep.subr.mxu0 %v884
    %956 = vmatpush1.msra.mxu0 %v883
    %957 = vmatprep.subr.mxu0 %v886
    %958 = vmatpush1.msra.mxu0 %v885
    %959 = vmatprep.subr.mxu0 %v888
    %960 = vmatpush1.msra.mxu0 %v887
    %961 = vmatprep.subr.mxu0 %v890
    %962 = vmatpush1.msra.mxu0 %v889
    %963 = vmatprep.subr.mxu0 %v892
    %964 = vmatpush1.msra.mxu0 %v891
    %965 = vmatprep.subr.mxu0 %v894
    %966 = vmatpush1.msra.mxu0 %v893
    %967 = vmatprep.subr.mxu0 %v896
    %968 = vmatpush1.msra.mxu0 %v895
    %969 = vmatprep.subr.mxu0 %v898
    %970 = vmatpush1.msra.mxu0 %v897
    %971 = vmatprep.subr.mxu0 %v900
    %972 = vmatpush1.msra.mxu0 %v899
    %973 = vmatprep.subr.mxu0 %v902
    %974 = vmatpush1.msra.mxu0 %v901
    %975 = vmatprep.subr.mxu0 %v904
    %976 = vmatpush1.msra.mxu0 %v903
    %977 = vmatprep.subr.mxu0 %v906
    %978 = vmatpush1.msra.mxu0 %v905
    %979 = vmatprep.subr.mxu0 %v908
    %980 = vmatpush1.msra.mxu0 %v907
    %981 = vmatprep.subr.mxu0 %v910
    %982 = vmatpush1.msra.mxu0 %v909
    %983 = vmatprep.subr.mxu0 %v912
    %984 = vmatpush1.msra.mxu0 %v911
    %985 = vmatprep.subr.mxu0 %v914
    %986 = vmatpush1.msra.mxu0 %v913
    %987 = vmatprep.subr.mxu0 %v916
    %988 = vmatpush1.msra.mxu0 %v915
    %989 = vmatprep.subr.mxu0 %v918
    %990 = vmatpush1.msra.mxu0 %v917
    %991 = vmatprep.subr.mxu0 %v920
    %992 = vmatpush1.msra.mxu0 %v919
    %993 = vmatprep.subr.mxu0 %v922
    %994 = vmatpush1.msra.mxu0 %v921
    %995 = vmatprep.subr.mxu0 %v924
    %996 = vmatpush1.msra.mxu0 %v923
    %997 = vmatprep.subr.mxu0 %v926
    %998 = vmatpush1.msra.mxu0 %v925
    %999 = vmatprep.subr.mxu0 %v928
    %1000 = vmatpush1.msra.mxu0 %v927
    %1001 = vmatprep.subr.mxu0 %v930
    %1002 = vmatpush1.msra.mxu0 %v929
    %1003 = vmatprep.subr.mxu0 %v932
    %1004 = vmatpush1.msra.mxu0 %v931
    %1005 = vmatprep.subr.mxu0 %v934
    %1006 = vmatpush1.msra.mxu0 %v933
    %1007 = vmatprep.subr.mxu0 %v936
    %1008 = vmatpush1.msra.mxu0 %v935
    %1009 = vmatprep.subr.mxu0 %v938
    %1010 = vmatpush1.msra.mxu0 %v937
    %1011 = vmatprep.subr.mxu0 %v940
    %1012 = vmatpush1.msra.mxu0 %v939
    %1013 = vmatprep.subr.mxu0 %v942
    %1014 = vmatpush1.msra.mxu0 %v941
    %1015 = vmatprep.subr.mxu0 %v944
    %1016 = vmatpush1.msra.mxu0 %v943
    %1017 = vmatprep.mubr.f32.mxu0 %v879
    %1018 = vmatmul.mubr.f32.gmra.mrb[0].mxu0 %v878
    %v1019 = vpop.f32.mrb[0].mxu0
    %v1020 = vadd.f32 %v948, %v1019
    %v1021 = vpop.f32.mrb[0].mxu0
    %v1022 = vadd.f32 %v952, %v1021
    %1023 = vdwg.mxu0
    %v1024 = vmax.f32 %v1020, 0.0
    %v1025 = vmax.f32 %v1022, 0.0
    %v1026 = vlaneseq
    %v1027 = vshrl.u32 %v1026, 7
    %v1028 = vsub.s32 6, %v1027
    %v1029 = vrot.slane %v87, %v1028
    %v1030 = vlaneseq
    %v1031 = vshrl.u32 %v1030, 7
    %v1032 = vsub.s32 6, %v1031
    %v1033 = vrot.slane %v88, %v1032
    %v1034 = vmul.f32 %v1024, %v1029
    %v1035 = vmul.f32 %v1025, %v1033
    %v1036 = vlaneseq
    %v1037 = vshrl.u32 %v1036, 7
    %v1038 = vsub.s32 7, %v1037
    %v1039 = vrot.slane %v87, %v1038
    %v1040 = vlaneseq
    %v1041 = vshrl.u32 %v1040, 7
    %v1042 = vsub.s32 7, %v1041
    %v1043 = vrot.slane %v88, %v1042
    %v1044 = vadd.f32 %v1034, %v1039
    %v1045 = vadd.f32 %v1035, %v1043
    %s1046 = scalar_lea.vmem [#allocation7], 3072
    %v1047 = vld [vmem:[%s1046] sm:$0xff]
    %v1048 = vld [vmem:[%s1046 + $0x8] sm:$0xff]
    %v1049 = vld [vmem:[%s1046 + $0x10] sm:$0xff]
    %v1050 = vld [vmem:[%s1046 + $0x18] sm:$0xff]
    %v1051 = vld [vmem:[%s1046 + $0x20] sm:$0xff]
    %v1052 = vld [vmem:[%s1046 + $0x28] sm:$0xff]
    %v1053 = vld [vmem:[%s1046 + $0x30] sm:$0xff]
    %v1054 = vld [vmem:[%s1046 + $0x38] sm:$0xff]
    %v1055 = vld [vmem:[%s1046 + $0x40] sm:$0xff]
    %v1056 = vld [vmem:[%s1046 + $0x48] sm:$0xff]
    %v1057 = vld [vmem:[%s1046 + $0x50] sm:$0xff]
    %v1058 = vld [vmem:[%s1046 + $0x58] sm:$0xff]
    %v1059 = vld [vmem:[%s1046 + $0x60] sm:$0xff]
    %v1060 = vld [vmem:[%s1046 + $0x68] sm:$0xff]
    %v1061 = vld [vmem:[%s1046 + $0x70] sm:$0xff]
    %v1062 = vld [vmem:[%s1046 + $0x78] sm:$0xff]
    %v1063 = vld [vmem:[%s1046 + $0x80] sm:$0xff]
    %v1064 = vld [vmem:[%s1046 + $0x88] sm:$0xff]
    %v1065 = vld [vmem:[%s1046 + $0x90] sm:$0xff]
    %v1066 = vld [vmem:[%s1046 + $0x98] sm:$0xff]
    %v1067 = vld [vmem:[%s1046 + $0xa0] sm:$0xff]
    %v1068 = vld [vmem:[%s1046 + $0xa8] sm:$0xff]
    %v1069 = vld [vmem:[%s1046 + $0xb0] sm:$0xff]
    %v1070 = vld [vmem:[%s1046 + $0xb8] sm:$0xff]
    %v1071 = vld [vmem:[%s1046 + $0xc0] sm:$0xff]
    %v1072 = vld [vmem:[%s1046 + $0xc8] sm:$0xff]
    %v1073 = vld [vmem:[%s1046 + $0xd0] sm:$0xff]
    %v1074 = vld [vmem:[%s1046 + $0xd8] sm:$0xff]
    %v1075 = vld [vmem:[%s1046 + $0xe0] sm:$0xff]
    %v1076 = vld [vmem:[%s1046 + $0xe8] sm:$0xff]
    %v1077 = vld [vmem:[%s1046 + $0xf0] sm:$0xff]
    %v1078 = vld [vmem:[%s1046 + $0xf8] sm:$0xff]
    %v1079 = vld [vmem:[%s1046 + $0x100] sm:$0xff]
    %v1080 = vld [vmem:[%s1046 + $0x108] sm:$0xff]
    %v1081 = vld [vmem:[%s1046 + $0x110] sm:$0xff]
    %v1082 = vld [vmem:[%s1046 + $0x118] sm:$0xff]
    %v1083 = vld [vmem:[%s1046 + $0x120] sm:$0xff]
    %v1084 = vld [vmem:[%s1046 + $0x128] sm:$0xff]
    %v1085 = vld [vmem:[%s1046 + $0x130] sm:$0xff]
    %v1086 = vld [vmem:[%s1046 + $0x138] sm:$0xff]
    %v1087 = vld [vmem:[%s1046 + $0x140] sm:$0xff]
    %v1088 = vld [vmem:[%s1046 + $0x148] sm:$0xff]
    %v1089 = vld [vmem:[%s1046 + $0x150] sm:$0xff]
    %v1090 = vld [vmem:[%s1046 + $0x158] sm:$0xff]
    %v1091 = vld [vmem:[%s1046 + $0x160] sm:$0xff]
    %v1092 = vld [vmem:[%s1046 + $0x168] sm:$0xff]
    %v1093 = vld [vmem:[%s1046 + $0x170] sm:$0xff]
    %v1094 = vld [vmem:[%s1046 + $0x178] sm:$0xff]
    %v1095 = vld [vmem:[%s1046 + $0x180] sm:$0xff]
    %v1096 = vld [vmem:[%s1046 + $0x188] sm:$0xff]
    %v1097 = vld [vmem:[%s1046 + $0x190] sm:$0xff]
    %v1098 = vld [vmem:[%s1046 + $0x198] sm:$0xff]
    %v1099 = vld [vmem:[%s1046 + $0x1a0] sm:$0xff]
    %v1100 = vld [vmem:[%s1046 + $0x1a8] sm:$0xff]
    %v1101 = vld [vmem:[%s1046 + $0x1b0] sm:$0xff]
    %v1102 = vld [vmem:[%s1046 + $0x1b8] sm:$0xff]
    %v1103 = vld [vmem:[%s1046 + $0x1c0] sm:$0xff]
    %v1104 = vld [vmem:[%s1046 + $0x1c8] sm:$0xff]
    %v1105 = vld [vmem:[%s1046 + $0x1d0] sm:$0xff]
    %v1106 = vld [vmem:[%s1046 + $0x1d8] sm:$0xff]
    %v1107 = vld [vmem:[%s1046 + $0x1e0] sm:$0xff]
    %v1108 = vld [vmem:[%s1046 + $0x1e8] sm:$0xff]
    %v1109 = vld [vmem:[%s1046 + $0x1f0] sm:$0xff]
    %v1110 = vld [vmem:[%s1046 + $0x1f8] sm:$0xff]
    %1111 = vmatprep.subr.mxu0 %v1048
    %1112 = vmatpush1.msra.mxu0 %v1047
    %1113 = vmatprep.subr.mxu0 %v1050
    %1114 = vmatpush1.msra.mxu0 %v1049
    %1115 = vmatprep.subr.mxu0 %v1052
    %1116 = vmatpush1.msra.mxu0 %v1051
    %1117 = vmatprep.subr.mxu0 %v1054
    %1118 = vmatpush1.msra.mxu0 %v1053
    %1119 = vmatprep.subr.mxu0 %v1056
    %1120 = vmatpush1.msra.mxu0 %v1055
    %1121 = vmatprep.subr.mxu0 %v1058
    %1122 = vmatpush1.msra.mxu0 %v1057
    %1123 = vmatprep.subr.mxu0 %v1060
    %1124 = vmatpush1.msra.mxu0 %v1059
    %1125 = vmatprep.subr.mxu0 %v1062
    %1126 = vmatpush1.msra.mxu0 %v1061
    %1127 = vmatprep.subr.mxu0 %v1064
    %1128 = vmatpush1.msra.mxu0 %v1063
    %1129 = vmatprep.subr.mxu0 %v1066
    %1130 = vmatpush1.msra.mxu0 %v1065
    %1131 = vmatprep.subr.mxu0 %v1068
    %1132 = vmatpush1.msra.mxu0 %v1067
    %1133 = vmatprep.subr.mxu0 %v1070
    %1134 = vmatpush1.msra.mxu0 %v1069
    %1135 = vmatprep.subr.mxu0 %v1072
    %1136 = vmatpush1.msra.mxu0 %v1071
    %1137 = vmatprep.subr.mxu0 %v1074
    %1138 = vmatpush1.msra.mxu0 %v1073
    %1139 = vmatprep.subr.mxu0 %v1076
    %1140 = vmatpush1.msra.mxu0 %v1075
    %1141 = vmatprep.subr.mxu0 %v1078
    %1142 = vmatpush1.msra.mxu0 %v1077
    %1143 = vmatprep.subr.mxu0 %v1080
    %1144 = vmatpush1.msra.mxu0 %v1079
    %1145 = vmatprep.subr.mxu0 %v1082
    %1146 = vmatpush1.msra.mxu0 %v1081
    %1147 = vmatprep.subr.mxu0 %v1084
    %1148 = vmatpush1.msra.mxu0 %v1083
    %1149 = vmatprep.subr.mxu0 %v1086
    %1150 = vmatpush1.msra.mxu0 %v1085
    %1151 = vmatprep.subr.mxu0 %v1088
    %1152 = vmatpush1.msra.mxu0 %v1087
    %1153 = vmatprep.subr.mxu0 %v1090
    %1154 = vmatpush1.msra.mxu0 %v1089
    %1155 = vmatprep.subr.mxu0 %v1092
    %1156 = vmatpush1.msra.mxu0 %v1091
    %1157 = vmatprep.subr.mxu0 %v1094
    %1158 = vmatpush1.msra.mxu0 %v1093
    %1159 = vmatprep.subr.mxu0 %v1096
    %1160 = vmatpush1.msra.mxu0 %v1095
    %1161 = vmatprep.subr.mxu0 %v1098
    %1162 = vmatpush1.msra.mxu0 %v1097
    %1163 = vmatprep.subr.mxu0 %v1100
    %1164 = vmatpush1.msra.mxu0 %v1099
    %1165 = vmatprep.subr.mxu0 %v1102
    %1166 = vmatpush1.msra.mxu0 %v1101
    %1167 = vmatprep.subr.mxu0 %v1104
    %1168 = vmatpush1.msra.mxu0 %v1103
    %1169 = vmatprep.subr.mxu0 %v1106
    %1170 = vmatpush1.msra.mxu0 %v1105
    %1171 = vmatprep.subr.mxu0 %v1108
    %1172 = vmatpush1.msra.mxu0 %v1107
    %1173 = vmatprep.subr.mxu0 %v1110
    %1174 = vmatpush1.msra.mxu0 %v1109
    %1175 = vmatprep.mubr.f32.mxu0 %v1045
    %1176 = vmatmul.mubr.f32.gmra.mrb[0].mxu0 %v1044
    %v1177 = vpop.f32.mrb[0].mxu0
    %v1178 = vadd.f32 0.0, %v1177
    %v1179 = vpop.f32.mrb[0].mxu0
    %v1180 = vadd.f32 0.0, %v1179
    %1181 = vdwg.mxu0
    %v1182 = vxor.u32 %v1178, 2147483648
    %v1183 = vxor.u32 %v1180, 2147483648
    %v1184 = vmul.f32 %v1182, 1.442695
    %v1185 = vpow.pop %v1184
    %v1186 = vmul.f32 %v1183, 1.442695
    %v1187 = vpow.pop %v1186
    %v1188 = vadd.f32 %v1185, 1.0
    %v1189 = vadd.f32 %v1187, 1.0
    %v1190 = vrcp.pop %v1188
    %v1191 = vmul.f32 1.0, %v1190
    %v1192 = vrcp.pop %v1189
    %v1193 = vmul.f32 1.0, %v1192
    %v1194 = vmul.f32 %v1044, %v1191
    %v1195 = vmul.f32 %v1045, %v1193
    %v1196 = vadd.f32 %v566, %v1194
    %v1197 = vadd.f32 %v567, %v1195
    %v1198 = vld [vmem:[#allocation8] sm:$0xff]
    %v1199 = vld [vmem:[#allocation8 + $0x8] sm:$0xff]
    %v1200 = vld [vmem:[#allocation8 + $0x10] sm:$0xff]
    %v1201 = vld [vmem:[#allocation8 + $0x18] sm:$0xff]
    %v1202 = vld [vmem:[#allocation8 + $0x20] sm:$0xff]
    %v1203 = vld [vmem:[#allocation8 + $0x28] sm:$0xff]
    %v1204 = vld [vmem:[#allocation8 + $0x30] sm:$0xff]
    %v1205 = vld [vmem:[#allocation8 + $0x38] sm:$0xff]
    %v1206 = vld [vmem:[#allocation8 + $0x40] sm:$0xff]
    %v1207 = vld [vmem:[#allocation8 + $0x48] sm:$0xff]
    %v1208 = vld [vmem:[#allocation8 + $0x50] sm:$0xff]
    %v1209 = vld [vmem:[#allocation8 + $0x58] sm:$0xff]
    %v1210 = vld [vmem:[#allocation8 + $0x60] sm:$0xff]
    %v1211 = vld [vmem:[#allocation8 + $0x68] sm:$0xff]
    %v1212 = vld [vmem:[#allocation8 + $0x70] sm:$0xff]
    %v1213 = vld [vmem:[#allocation8 + $0x78] sm:$0xff]
    %v1214 = vld [vmem:[#allocation8 + $0x80] sm:$0xff]
    %v1215 = vld [vmem:[#allocation8 + $0x88] sm:$0xff]
    %v1216 = vld [vmem:[#allocation8 + $0x90] sm:$0xff]
    %v1217 = vld [vmem:[#allocation8 + $0x98] sm:$0xff]
    %v1218 = vld [vmem:[#allocation8 + $0xa0] sm:$0xff]
    %v1219 = vld [vmem:[#allocation8 + $0xa8] sm:$0xff]
    %v1220 = vld [vmem:[#allocation8 + $0xb0] sm:$0xff]
    %v1221 = vld [vmem:[#allocation8 + $0xb8] sm:$0xff]
    %v1222 = vld [vmem:[#allocation8 + $0xc0] sm:$0xff]
    %v1223 = vld [vmem:[#allocation8 + $0xc8] sm:$0xff]
    %v1224 = vld [vmem:[#allocation8 + $0xd0] sm:$0xff]
    %v1225 = vld [vmem:[#allocation8 + $0xd8] sm:$0xff]
    %v1226 = vld [vmem:[#allocation8 + $0xe0] sm:$0xff]
    %v1227 = vld [vmem:[#allocation8 + $0xe8] sm:$0xff]
    %v1228 = vld [vmem:[#allocation8 + $0xf0] sm:$0xff]
    %v1229 = vld [vmem:[#allocation8 + $0xf8] sm:$0xff]
    %v1230 = vld [vmem:[#allocation10] sm:$0x1]
    %v1232 = vlaneseq
    %v1233 = vshrl.u32 %v1232, 7
    %v1234 = vsub.s32 0, %v1233
    %v1235 = vrot.slane %v1230, %v1234
    %1237 = vmatprep.subr.mxu0 0.0
    %1238 = vmatpush1.msra.mxu0 %v1198
    %1239 = vmatprep.subr.mxu0 0.0
    %1240 = vmatpush1.msra.mxu0 %v1199
    %1241 = vmatprep.subr.mxu0 0.0
    %1242 = vmatpush1.msra.mxu0 %v1200
    %1243 = vmatprep.subr.mxu0 0.0
    %1244 = vmatpush1.msra.mxu0 %v1201
    %1245 = vmatprep.subr.mxu0 0.0
    %1246 = vmatpush1.msra.mxu0 %v1202
    %1247 = vmatprep.subr.mxu0 0.0
    %1248 = vmatpush1.msra.mxu0 %v1203
    %1249 = vmatprep.subr.mxu0 0.0
    %1250 = vmatpush1.msra.mxu0 %v1204
    %1251 = vmatprep.subr.mxu0 0.0
    %1252 = vmatpush1.msra.mxu0 %v1205
    %1253 = vmatprep.subr.mxu0 0.0
    %1254 = vmatpush1.msra.mxu0 %v1206
    %1255 = vmatprep.subr.mxu0 0.0
    %1256 = vmatpush1.msra.mxu0 %v1207
    %1257 = vmatprep.subr.mxu0 0.0
    %1258 = vmatpush1.msra.mxu0 %v1208
    %1259 = vmatprep.subr.mxu0 0.0
    %1260 = vmatpush1.msra.mxu0 %v1209
    %1261 = vmatprep.subr.mxu0 0.0
    %1262 = vmatpush1.msra.mxu0 %v1210
    %1263 = vmatprep.subr.mxu0 0.0
    %1264 = vmatpush1.msra.mxu0 %v1211
    %1265 = vmatprep.subr.mxu0 0.0
    %1266 = vmatpush1.msra.mxu0 %v1212
    %1267 = vmatprep.subr.mxu0 0.0
    %1268 = vmatpush1.msra.mxu0 %v1213
    %1269 = vmatprep.subr.mxu0 0.0
    %1270 = vmatpush1.msra.mxu0 %v1214
    %1271 = vmatprep.subr.mxu0 0.0
    %1272 = vmatpush1.msra.mxu0 %v1215
    %1273 = vmatprep.subr.mxu0 0.0
    %1274 = vmatpush1.msra.mxu0 %v1216
    %1275 = vmatprep.subr.mxu0 0.0
    %1276 = vmatpush1.msra.mxu0 %v1217
    %1277 = vmatprep.subr.mxu0 0.0
    %1278 = vmatpush1.msra.mxu0 %v1218
    %1279 = vmatprep.subr.mxu0 0.0
    %1280 = vmatpush1.msra.mxu0 %v1219
    %1281 = vmatprep.subr.mxu0 0.0
    %1282 = vmatpush1.msra.mxu0 %v1220
    %1283 = vmatprep.subr.mxu0 0.0
    %1284 = vmatpush1.msra.mxu0 %v1221
    %1285 = vmatprep.subr.mxu0 0.0
    %1286 = vmatpush1.msra.mxu0 %v1222
    %1287 = vmatprep.subr.mxu0 0.0
    %1288 = vmatpush1.msra.mxu0 %v1223
    %1289 = vmatprep.subr.mxu0 0.0
    %1290 = vmatpush1.msra.mxu0 %v1224
    %1291 = vmatprep.subr.mxu0 0.0
    %1292 = vmatpush1.msra.mxu0 %v1225
    %1293 = vmatprep.subr.mxu0 0.0
    %1294 = vmatpush1.msra.mxu0 %v1226
    %1295 = vmatprep.subr.mxu0 0.0
    %1296 = vmatpush1.msra.mxu0 %v1227
    %1297 = vmatprep.subr.mxu0 0.0
    %1298 = vmatpush1.msra.mxu0 %v1228
    %1299 = vmatprep.subr.mxu0 0.0
    %1300 = vmatpush1.msra.mxu0 %v1229
    %1301 = vmatprep.mubr.f32.mxu0 %v1197
    %1302 = vmatmul.mubr.f32.gmra.mrb[0].mxu0 %v1196
    %v1303 = vpop.f32.mrb[0].mxu0
    %v1304 = vadd.f32 %v1235, %v1303
    %v1305 = vpop.f32.mrb[0].mxu0
    %1306 = vdwg.mxu0
    %1307 = vst [vmem:[#allocation11] sm:$0xff] %v1304
    // Predicated region
    $region42: #{tpu_custom_call.1} parent=1 // pred_check
      _
    $region43: #{tpu_custom_call.1} parent=1 // pred_check_branch
      %1309 = sbr.rel (0) target = $region45
    $region44: #{tpu_custom_call.1} parent=1 // pred_region
      %s1311 = ssub.s32 128, 128
      %1312 = vsyncadd [#allocation4], %s1311
      %s1314 = sshll.u32 [#allocation11], 4
      %s1315 = int_to_ptr.vmem [resolvable:$true] %s1314
      %1317 = dma.vmem_to_hbm [thread:$0]  %s1315, 128, %s5, [#allocation4]
    $region45: #{tpu_custom_call.1} parent=1 // pred_fallthru
      _
    // Predicated region
    $region46: #{tpu_custom_call.1} parent=1 // pred_check
      _
    $region47: #{tpu_custom_call.1} parent=1 // pred_check_branch
      %1319 = sbr.rel (0) target = $region49
    $region48: #{tpu_custom_call.1} parent=1 // pred_region
      %1320 = dma.done [#allocation4], 128
    $region49: #{tpu_custom_call.1} parent=1 // pred_fallthru
      _
    %1321 = vsyncpa [#allocation3], 1
    %1322 = vsyncpa [#allocation6], 1
    %1323 = vsyncpa [#allocation9], 1
    %1324 = vsyncpa [#allocation4], 1

</llo_original>
